<compile_context>
chip_gen: v7x
topology: tpu7x:2x2x1
jax: 0.10.0
libtpu: 0.0.40
codegen_flags: <defaults>
</compile_context>

<pallas_src>
import math
import functools

import jax
import jax.numpy as jnp
from jax import lax
from jax.experimental import pallas as pl
from jax.experimental.pallas import tpu as pltpu


def _flash_attn_kernel(xq_ref, xkv_ref, wq_ref, wkv_ref, wp_ref,
                       bq_ref, bkv_ref, bp_ref, out_ref,
                       q_scr, m_scr, l_scr, acc_scr, *, n_head, scale):
    # xq_ref/xkv_ref: (1, TQ, C) / (1, TKV, C) bf16 blocks of x
    # wq: (C, C), wkv: (C, 2C), wp: (C, C) bf16;  biases f32 (1, C)/(1, 2C)
    # out_ref: (1, TQ, C);  scratch: q (H,TQ,dh) bf16, m/l (H,TQ,1) f32, acc (H,TQ,dh) f32
    _, TQ, C = xq_ref.shape
    TKV = xkv_ref.shape[1]
    dh = C // n_head

    qi = pl.program_id(1)
    ki = pl.program_id(2)
    nk = pl.num_programs(2)

    q_start = qi * TQ
    kv_start = ki * TKV
    NEG = jnp.float32(-1e30)  # large finite negative: no NaN even for fully-masked rows

    @pl.when(ki == 0)
    def _init():
        # Q projection for this query tile, done once and kept resident across KV tiles.
        xq = xq_ref[0]                                                   # (TQ, C) bf16
        q = jnp.dot(xq, wq_ref[...], preferred_element_type=jnp.float32) + bq_ref[...]
        q = q * scale                                                    # fold 1/sqrt(dh) into Q
        q = q.reshape(TQ, n_head, dh).transpose(1, 0, 2)                 # (H, TQ, dh)
        q_scr[...] = q.astype(q_scr.dtype)
        m_scr[...] = jnp.full_like(m_scr, NEG)
        l_scr[...] = jnp.zeros_like(l_scr)
        acc_scr[...] = jnp.zeros_like(acc_scr)

    # Causal tile skip: KV tiles entirely above the diagonal contribute nothing.
    @pl.when(kv_start <= q_start + TQ - 1)
    def _compute():
        xkv = xkv_ref[0]                                                 # (TKV, C) bf16
        # Fused K|V projection: one MXU pass with N = 2C.
        kv = jnp.dot(xkv, wkv_ref[...], preferred_element_type=jnp.float32) + bkv_ref[...]
        k = kv[:, :C].reshape(TKV, n_head, dh).transpose(1, 0, 2)        # (H, TKV, dh) f32
        v = kv[:, C:].reshape(TKV, n_head, dh).transpose(1, 0, 2)        # (H, TKV, dh) f32

        # Head-batched scores (no per-head Python loop, no concatenate).
        s = jnp.einsum("htd,hsd->hts",
                       q_scr[...], k.astype(jnp.bfloat16),
                       preferred_element_type=jnp.float32)               # (H, TQ, TKV)

        row = q_start + lax.broadcasted_iota(jnp.int32, (TQ, TKV), 0)
        col = kv_start + lax.broadcasted_iota(jnp.int32, (TQ, TKV), 1)
        s = jnp.where((col <= row)[None, :, :], s, NEG)

        # Online softmax update (all in f32).
        m_prev = m_scr[...]
        m_new = jnp.maximum(m_prev, jnp.max(s, axis=-1, keepdims=True))
        alpha = jnp.exp(m_prev - m_new)
        p = jnp.exp(s - m_new)                                           # (H, TQ, TKV)
        l_scr[...] = alpha * l_scr[...] + jnp.sum(p, axis=-1, keepdims=True)
        acc_scr[...] = alpha * acc_scr[...] + jnp.einsum(
            "hts,hsd->htd", p.astype(jnp.bfloat16), v.astype(jnp.bfloat16),
            preferred_element_type=jnp.float32)
        m_scr[...] = m_new

    @pl.when(ki == nk - 1)
    def _finalize():
        # Softmax denominator applied to (H, TQ, dh) output (EUP approx reciprocal),
        # not to the (T, T) probability matrix.
        y = acc_scr[...] * pl.reciprocal(l_scr[...], approx=True)        # (H, TQ, dh)
        y = y.transpose(1, 0, 2).reshape(TQ, C)                          # merge heads
        out = jnp.dot(y.astype(jnp.bfloat16), wp_ref[...],
                      preferred_element_type=jnp.float32) + bp_ref[...]
        out_ref[0] = out.astype(out_ref.dtype)
        # TODO(synk): resid dropout (identity in inference).


def causal_self_attention(x, params, n_head):
    """x: (B, T, C) float32.  params: PyTorch-convention (out, in) Linear weights."""
    B, T, C = x.shape
    assert C % n_head == 0
    dh = C // n_head

    # Query / KV tile sizes (full T at toy scale; 128 at production scale --
    # multiples of 128/256 keep the MXU occupied on v5e/v6e/v7x).
    TQ = T if T <= 128 else 128
    TKV = T if T <= 128 else 128
    assert T % TQ == 0 and T % TKV == 0
    nq, nk = T // TQ, T // TKV

    f32, bf16 = jnp.float32, jnp.bfloat16

    # Transpose PyTorch Linear weights (out,in) -> (in,out); fuse K|V; cast to bf16
    # for the MXU (f32 accumulation inside the kernel).
    wq = params["wq"].T.astype(bf16)                                      # (C, C)
    wkv = jnp.concatenate([params["wk"].T, params["wv"].T], axis=1).astype(bf16)  # (C, 2C)
    wp = params["wp"].T.astype(bf16)                                      # (C, C)
    bq = params["bq"].reshape(1, C).astype(f32)
    bkv = jnp.concatenate([params["bk"], params["bv"]]).reshape(1, 2 * C).astype(f32)
    bp = params["bp"].reshape(1, C).astype(f32)
    x_bf = x.astype(bf16)

    kernel = functools.partial(_flash_attn_kernel, n_head=n_head,
                               scale=1.0 / math.sqrt(dh))

    cost = pl.CostEstimate(
        flops=int(2 * B * T * C * 4 * C + 4 * B * n_head * T * T * dh),
        transcendentals=int(B * n_head * T * T),
        bytes_accessed=int(B * T * C * 2            # xq stream (bf16)
                           + B * nq * T * C * 2     # xkv stream (re-read per q tile)
                           + 4 * C * C * 2          # weights (bf16)
                           + B * T * C * 4),        # output (f32)
    )

    grid_spec = pltpu.PrefetchScalarGridSpec(
        num_scalar_prefetch=0,
        grid=(B, nq, nk),                           # kv axis innermost (reduction)
        in_specs=[
            pl.BlockSpec((1, TQ, C), lambda b, qi, ki: (b, qi, 0)),   # x rows -> Q
            pl.BlockSpec((1, TKV, C), lambda b, qi, ki: (b, ki, 0)),  # x rows -> K/V
            pl.BlockSpec((C, C), lambda b, qi, ki: (0, 0)),           # Wq
            pl.BlockSpec((C, 2 * C), lambda b, qi, ki: (0, 0)),       # W[k|v] fused
            pl.BlockSpec((C, C), lambda b, qi, ki: (0, 0)),           # Wproj
            pl.BlockSpec((1, C), lambda b, qi, ki: (0, 0)),           # bq
            pl.BlockSpec((1, 2 * C), lambda b, qi, ki: (0, 0)),       # b[k|v]
            pl.BlockSpec((1, C), lambda b, qi, ki: (0, 0)),           # bproj
        ],
        out_specs=pl.BlockSpec((1, TQ, C), lambda b, qi, ki: (b, qi, 0)),
        scratch_shapes=[
            pltpu.VMEM((n_head, TQ, dh), bf16),     # scaled Q, resident across kv tiles
            pltpu.VMEM((n_head, TQ, 1), f32),       # running max m
            pltpu.VMEM((n_head, TQ, 1), f32),       # running denom l
            pltpu.VMEM((n_head, TQ, dh), f32),      # unnormalized output acc
        ],
    )

    return pl.pallas_call(
        kernel,
        out_shape=jax.ShapeDtypeStruct((B, T, C), x.dtype),
        grid_spec=grid_spec,
        compiler_params=pltpu.CompilerParams(
            dimension_semantics=("parallel", "parallel", "arbitrary"),
            vmem_limit_bytes=64 * 1024 * 1024,
        ),
        cost_estimate=cost,
    )(x_bf, x_bf, wq, wkv, wp, bq, bkv, bp)


def _reference(x, params, n_head):
    """Pure-JAX f32 reference mirroring the PyTorch forward (dropout = identity)."""
    B, T, C = x.shape
    dh = C // n_head

    def lin(x, w, b):
        return x @ w.T + b

    k = lin(x, params["wk"], params["bk"]).reshape(B, T, n_head, dh).transpose(0, 2, 1, 3)
    q = lin(x, params["wq"], params["bq"]).reshape(B, T, n_head, dh).transpose(0, 2, 1, 3)
    v = lin(x, params["wv"], params["bv"]).reshape(B, T, n_head, dh).transpose(0, 2, 1, 3)

    att = jnp.einsum("bhqd,bhkd->bhqk", q, k) * (1.0 / math.sqrt(dh))
    mask = jnp.tril(jnp.ones((T, T), dtype=bool))
    att = jnp.where(mask[None, None], att, -jnp.inf)
    att = jax.nn.softmax(att, axis=-1)
    y = jnp.einsum("bhqk,bhkd->bhqd", att, v)
    y = y.transpose(0, 2, 1, 3).reshape(B, T, C)
    return lin(y, params["wp"], params["bp"])


if __name__ == "__main__":
    B, T, C, n_head = 2, 8, 32, 4

    key = jax.random.PRNGKey(0)
    keys = jax.random.split(key, 9)
    std = 1.0 / math.sqrt(C)
    params = {
        "wq": jax.random.uniform(keys[0], (C, C), jnp.float32, -std, std),
        "wk": jax.random.uniform(keys[1], (C, C), jnp.float32, -std, std),
        "wv": jax.random.uniform(keys[2], (C, C), jnp.float32, -std, std),
        "wp": jax.random.uniform(keys[3], (C, C), jnp.float32, -std, std),
        "bq": jax.random.uniform(keys[4], (C,), jnp.float32, -std, std),
        "bk": jax.random.uniform(keys[5], (C,), jnp.float32, -std, std),
        "bv": jax.random.uniform(keys[6], (C,), jnp.float32, -std, std),
        "bp": jax.random.uniform(keys[7], (C,), jnp.float32, -std, std),
    }
    x = jax.random.normal(keys[8], (B, T, C), jnp.float32)

    out = causal_self_attention(x, params, n_head)
    out = jax.block_until_ready(out)

    ref = _reference(x, params, n_head)
    assert out.shape == (B, T, C)
    # bf16 MXU inputs with f32 accumulation -> relaxed tolerance vs the f32 reference.
    assert jnp.allclose(out, ref, atol=2e-2, rtol=2e-2), "mismatch vs reference"

    print("KERNEL_OK")
</pallas_src>

<mosaic_0001>
module attributes {stable_mosaic.version = 11 : i64} {
  func.func @_flash_attn_kernel(%arg0: i32, %arg1: i32, %arg2: i32, %arg3: memref<1x8x32xbf16, #tpu.memory_space<vmem>>, %arg4: memref<1x8x32xbf16, #tpu.memory_space<vmem>>, %arg5: memref<32x32xbf16, #tpu.memory_space<vmem>>, %arg6: memref<32x64xbf16, #tpu.memory_space<vmem>>, %arg7: memref<32x32xbf16, #tpu.memory_space<vmem>>, %arg8: memref<1x32xf32, #tpu.memory_space<vmem>>, %arg9: memref<1x64xf32, #tpu.memory_space<vmem>>, %arg10: memref<1x32xf32, #tpu.memory_space<vmem>>, %arg11: memref<1x8x32xf32, #tpu.memory_space<vmem>>, %arg12: memref<4x8x8xbf16, #tpu.memory_space<vmem>>, %arg13: memref<4x8x1xf32, #tpu.memory_space<vmem>>, %arg14: memref<4x8x1xf32, #tpu.memory_space<vmem>>, %arg15: memref<4x8x8xf32, #tpu.memory_space<vmem>>) attributes {dimension_semantics = [#tpu.dimension_semantics<parallel>, #tpu.dimension_semantics<parallel>, #tpu.dimension_semantics<arbitrary>], iteration_bounds = array<i64: 2, 1, 1>, scalar_prefetch = 0 : i64, scratch_operands = 4 : i64, tpu.core_type = #tpu.core_type<tc>, window_params = [{transform_indices = @transform_0, window_bounds = array<i64: 1, 8, 32>}, {transform_indices = @transform_1, window_bounds = array<i64: 1, 8, 32>}, {pipeline_mode = #tpu.pipeline_mode<synchronous>, transform_indices = @transform_2, window_bounds = array<i64: 32, 32>}, {pipeline_mode = #tpu.pipeline_mode<synchronous>, transform_indices = @transform_3, window_bounds = array<i64: 32, 64>}, {pipeline_mode = #tpu.pipeline_mode<synchronous>, transform_indices = @transform_4, window_bounds = array<i64: 32, 32>}, {pipeline_mode = #tpu.pipeline_mode<synchronous>, transform_indices = @transform_5, window_bounds = array<i64: 1, 32>}, {pipeline_mode = #tpu.pipeline_mode<synchronous>, transform_indices = @transform_6, window_bounds = array<i64: 1, 64>}, {pipeline_mode = #tpu.pipeline_mode<synchronous>, transform_indices = @transform_7, window_bounds = array<i64: 1, 32>}, {transform_indices = @transform_8, window_bounds = array<i64: 1, 8, 32>}]} {
    %c8_i32 = arith.constant 8 : i32
    %0 = arith.muli %arg1, %c8_i32 : i32
    %c8_i32_0 = arith.constant 8 : i32
    %1 = arith.muli %arg2, %c8_i32_0 : i32
    %c0_i32 = arith.constant 0 : i32
    %2 = arith.cmpi eq, %arg2, %c0_i32 : i32
    %3 = arith.extui %2 : i1 to i32
    %cst = arith.constant -1.000000e+30 : f32
    %c0_i32_1 = arith.constant 0 : i32
    %4 = arith.cmpi ne, %3, %c0_i32_1 : i32
    scf.if %4 {
      %c0 = arith.constant 0 : index
      %c0_7 = arith.constant 0 : index
      %c0_8 = arith.constant 0 : index
      %13 = vector.load %arg3[%c0, %c0_7, %c0_8] : memref<1x8x32xbf16, #tpu.memory_space<vmem>>, vector<1x8x32xbf16>
      %14 = vector.shape_cast %13 : vector<1x8x32xbf16> to vector<8x32xbf16>
      %c0_9 = arith.constant 0 : index
      %c0_10 = arith.constant 0 : index
      %15 = vector.load %arg5[%c0_9, %c0_10] : memref<32x32xbf16, #tpu.memory_space<vmem>>, vector<32x32xbf16>
      %cst_11 = arith.constant dense<0.000000e+00> : vector<8x32xf32>
      %16 = tpu.matmul %14, %15, %cst_11 {dimension_numbers = #tpu.dot_dimension_numbers<[1], [0], [0], [1], [0, 0, 1, 1], [], []>} : vector<8x32xbf16>, vector<32x32xbf16>, vector<8x32xf32> -> vector<8x32xf32>
      %c0_12 = arith.constant 0 : index
      %c0_13 = arith.constant 0 : index
      %17 = vector.load %arg8[%c0_12, %c0_13] : memref<1x32xf32, #tpu.memory_space<vmem>>, vector<1x32xf32>
      %18 = vector.broadcast %17 : vector<1x32xf32> to vector<8x32xf32>
      %19 = arith.addf %16, %18 : vector<8x32xf32>
      %cst_14 = arith.constant 0.353553385 : f32
      %20 = vector.broadcast %cst_14 : f32 to vector<8x32xf32>
      %21 = arith.mulf %19, %20 : vector<8x32xf32>
      %22 = vector.shape_cast %21 : vector<8x32xf32> to vector<8x4x8xf32>
      %23 = tpu.transpose %22, [1, 0, 2] : vector<8x4x8xf32> -> vector<4x8x8xf32>
      %24 = arith.truncf %23 : vector<4x8x8xf32> to vector<4x8x8xbf16>
      %c0_15 = arith.constant 0 : index
      %c0_16 = arith.constant 0 : index
      %c0_17 = arith.constant 0 : index
      %25 = vector.load %arg12[%c0_15, %c0_16, %c0_17] : memref<4x8x8xbf16, #tpu.memory_space<vmem>>, vector<4x8x8xbf16>
      tpu.vector_store %arg12[%c0_15, %c0_16, %c0_17], %24 {strides = array<i32>} : memref<4x8x8xbf16, #tpu.memory_space<vmem>>, vector<4x8x8xbf16>,
      %26 = vector.broadcast %cst : f32 to vector<4x8x1xf32>
      %c0_18 = arith.constant 0 : index
      %c0_19 = arith.constant 0 : index
      %c0_20 = arith.constant 0 : index
      %27 = vector.load %arg13[%c0_18, %c0_19, %c0_20] : memref<4x8x1xf32, #tpu.memory_space<vmem>>, vector<4x8x1xf32>
      tpu.vector_store %arg13[%c0_18, %c0_19, %c0_20], %26 {strides = array<i32>} : memref<4x8x1xf32, #tpu.memory_space<vmem>>, vector<4x8x1xf32>,
      %cst_21 = arith.constant 0.000000e+00 : f32
      %28 = vector.broadcast %cst_21 : f32 to vector<4x8x1xf32>
      %c0_22 = arith.constant 0 : index
      %c0_23 = arith.constant 0 : index
      %c0_24 = arith.constant 0 : index
      %29 = vector.load %arg14[%c0_22, %c0_23, %c0_24] : memref<4x8x1xf32, #tpu.memory_space<vmem>>, vector<4x8x1xf32>
      tpu.vector_store %arg14[%c0_22, %c0_23, %c0_24], %28 {strides = array<i32>} : memref<4x8x1xf32, #tpu.memory_space<vmem>>, vector<4x8x1xf32>,
      %cst_25 = arith.constant 0.000000e+00 : f32
      %30 = vector.broadcast %cst_25 : f32 to vector<4x8x8xf32>
      %c0_26 = arith.constant 0 : index
      %c0_27 = arith.constant 0 : index
      %c0_28 = arith.constant 0 : index
      %31 = vector.load %arg15[%c0_26, %c0_27, %c0_28] : memref<4x8x8xf32, #tpu.memory_space<vmem>>, vector<4x8x8xf32>
      tpu.vector_store %arg15[%c0_26, %c0_27, %c0_28], %30 {strides = array<i32>} : memref<4x8x8xf32, #tpu.memory_space<vmem>>, vector<4x8x8xf32>,
    } else {
    }
    %c8_i32_2 = arith.constant 8 : i32
    %5 = arith.addi %0, %c8_i32_2 : i32
    %c1_i32 = arith.constant 1 : i32
    %6 = arith.subi %5, %c1_i32 : i32
    %7 = arith.cmpi sle, %1, %6 : i32
    %8 = arith.extui %7 : i1 to i32
    %cst_3 = arith.constant -1.000000e+30 : f32
    %c0_i32_4 = arith.constant 0 : i32
    %9 = arith.cmpi ne, %8, %c0_i32_4 : i32
    scf.if %9 {
      %c0 = arith.constant 0 : index
      %c0_7 = arith.constant 0 : index
      %c0_8 = arith.constant 0 : index
      %13 = vector.load %arg4[%c0, %c0_7, %c0_8] : memref<1x8x32xbf16, #tpu.memory_space<vmem>>, vector<1x8x32xbf16>
      %14 = vector.shape_cast %13 : vector<1x8x32xbf16> to vector<8x32xbf16>
      %c0_9 = arith.constant 0 : index
      %c0_10 = arith.constant 0 : index
      %15 = vector.load %arg6[%c0_9, %c0_10] : memref<32x64xbf16, #tpu.memory_space<vmem>>, vector<32x64xbf16>
      %cst_11 = arith.constant dense<0.000000e+00> : vector<8x64xf32>
      %16 = tpu.matmul %14, %15, %cst_11 {dimension_numbers = #tpu.dot_dimension_numbers<[1], [0], [0], [1], [0, 0, 1, 1], [], []>} : vector<8x32xbf16>, vector<32x64xbf16>, vector<8x64xf32> -> vector<8x64xf32>
      %c0_12 = arith.constant 0 : index
      %c0_13 = arith.constant 0 : index
      %17 = vector.load %arg9[%c0_12, %c0_13] : memref<1x64xf32, #tpu.memory_space<vmem>>, vector<1x64xf32>
      %18 = vector.broadcast %17 : vector<1x64xf32> to vector<8x64xf32>
      %19 = arith.addf %16, %18 : vector<8x64xf32>
      %20 = vector.extract_strided_slice %19 {offsets = [0, 0], sizes = [8, 32], strides = [1, 1]} : vector<8x64xf32> to vector<8x32xf32>
      %21 = vector.shape_cast %20 : vector<8x32xf32> to vector<8x4x8xf32>
      %22 = tpu.transpose %21, [1, 0, 2] : vector<8x4x8xf32> -> vector<4x8x8xf32>
      %23 = vector.extract_strided_slice %19 {offsets = [0, 32], sizes = [8, 32], strides = [1, 1]} : vector<8x64xf32> to vector<8x32xf32>
      %24 = vector.shape_cast %23 : vector<8x32xf32> to vector<8x4x8xf32>
      %25 = tpu.transpose %24, [1, 0, 2] : vector<8x4x8xf32> -> vector<4x8x8xf32>
      %c0_14 = arith.constant 0 : index
      %c0_15 = arith.constant 0 : index
      %c0_16 = arith.constant 0 : index
      %26 = vector.load %arg12[%c0_14, %c0_15, %c0_16] : memref<4x8x8xbf16, #tpu.memory_space<vmem>>, vector<4x8x8xbf16>
      %27 = arith.truncf %22 : vector<4x8x8xf32> to vector<4x8x8xbf16>
      "tpu.trace_start"() <{level = 10 : i32, message = "htd,hsd->hts"}> : () -> ()
      %cst_17 = arith.constant dense<0.000000e+00> : vector<4x8x8xf32>
      %28 = tpu.matmul %26, %27, %cst_17 {dimension_numbers = #tpu.dot_dimension_numbers<[2], [2], [1], [1], [0, 0, 0, 1, 1, 1], [0], [0]>} : vector<4x8x8xbf16>, vector<4x8x8xbf16>, vector<4x8x8xf32> -> vector<4x8x8xf32>
      "tpu.trace_stop"() : () -> ()
      %29 = tpu.iota {dimensions = array<i32: 0>} : vector<8x8xi32>
      %30 = vector.broadcast %0 : i32 to vector<8x8xi32>
      %31 = arith.addi %30, %29 : vector<8x8xi32>
      %32 = tpu.iota {dimensions = array<i32: 1>} : vector<8x8xi32>
      %33 = vector.broadcast %1 : i32 to vector<8x8xi32>
      %34 = arith.addi %33, %32 : vector<8x8xi32>
      %35 = arith.cmpi sle, %34, %31 : vector<8x8xi32>
      %36 = vector.shape_cast %35 : vector<8x8xi1> to vector<1x8x8xi1>
      %37 = vector.shape_cast %36 : vector<1x8x8xi1> to vector<1x8x8xi1>
      %38 = vector.broadcast %37 : vector<1x8x8xi1> to vector<4x8x8xi1>
      %39 = vector.broadcast %cst_3 : f32 to vector<4x8x8xf32>
      %40 = arith.select %38, %28, %39 : vector<4x8x8xi1>, vector<4x8x8xf32>
      %c0_18 = arith.constant 0 : index
      %c0_19 = arith.constant 0 : index
      %c0_20 = arith.constant 0 : index
      %41 = vector.load %arg13[%c0_18, %c0_19, %c0_20] : memref<4x8x1xf32, #tpu.memory_space<vmem>>, vector<4x8x1xf32>
      %cst_21 = arith.constant dense<0xFF800000> : vector<4x8xf32>
      %42 = vector.multi_reduction <maximumf>, %40, %cst_21 [2] : vector<4x8x8xf32> to vector<4x8xf32>
      %43 = vector.shape_cast %42 : vector<4x8xf32> to vector<4x8x1xf32>
      %44 = arith.maximumf %41, %43 : vector<4x8x1xf32>
      %45 = arith.subf %41, %44 : vector<4x8x1xf32>
      %46 = math.exp %45 : vector<4x8x1xf32>
      %47 = vector.broadcast %44 : vector<4x8x1xf32> to vector<4x8x8xf32>
      %48 = arith.subf %40, %47 : vector<4x8x8xf32>
      %49 = math.exp %48 : vector<4x8x8xf32>
      %c0_22 = arith.constant 0 : index
      %c0_23 = arith.constant 0 : index
      %c0_24 = arith.constant 0 : index
      %50 = vector.load %arg14[%c0_22, %c0_23, %c0_24] : memref<4x8x1xf32, #tpu.memory_space<vmem>>, vector<4x8x1xf32>
      %51 = arith.mulf %46, %50 : vector<4x8x1xf32>
      %cst_25 = arith.constant dense<0.000000e+00> : vector<4x8xf32>
      %52 = vector.multi_reduction <add>, %49, %cst_25 [2] : vector<4x8x8xf32> to vector<4x8xf32>
      %53 = vector.shape_cast %52 : vector<4x8xf32> to vector<4x8x1xf32>
      %54 = arith.addf %51, %53 : vector<4x8x1xf32>
      %c0_26 = arith.constant 0 : index
      %c0_27 = arith.constant 0 : index
      %c0_28 = arith.constant 0 : index
      %55 = vector.load %arg14[%c0_26, %c0_27, %c0_28] : memref<4x8x1xf32, #tpu.memory_space<vmem>>, vector<4x8x1xf32>
      tpu.vector_store %arg14[%c0_26, %c0_27, %c0_28], %54 {strides = array<i32>} : memref<4x8x1xf32, #tpu.memory_space<vmem>>, vector<4x8x1xf32>,
      %c0_29 = arith.constant 0 : index
      %c0_30 = arith.constant 0 : index
      %c0_31 = arith.constant 0 : index
      %56 = vector.load %arg15[%c0_29, %c0_30, %c0_31] : memref<4x8x8xf32, #tpu.memory_space<vmem>>, vector<4x8x8xf32>
      %57 = vector.broadcast %46 : vector<4x8x1xf32> to vector<4x8x8xf32>
      %58 = arith.mulf %57, %56 : vector<4x8x8xf32>
      %59 = arith.truncf %49 : vector<4x8x8xf32> to vector<4x8x8xbf16>
      %60 = arith.truncf %25 : vector<4x8x8xf32> to vector<4x8x8xbf16>
      "tpu.trace_start"() <{level = 10 : i32, message = "hts,hsd->htd"}> : () -> ()
      %cst_32 = arith.constant dense<0.000000e+00> : vector<4x8x8xf32>
      %61 = tpu.matmul %59, %60, %cst_32 {dimension_numbers = #tpu.dot_dimension_numbers<[2], [1], [1], [2], [0, 0, 0, 1, 1, 2], [0], [0]>} : vector<4x8x8xbf16>, vector<4x8x8xbf16>, vector<4x8x8xf32> -> vector<4x8x8xf32>
      "tpu.trace_stop"() : () -> ()
      %62 = arith.addf %58, %61 : vector<4x8x8xf32>
      %c0_33 = arith.constant 0 : index
      %c0_34 = arith.constant 0 : index
      %c0_35 = arith.constant 0 : index
      %63 = vector.load %arg15[%c0_33, %c0_34, %c0_35] : memref<4x8x8xf32, #tpu.memory_space<vmem>>, vector<4x8x8xf32>
      tpu.vector_store %arg15[%c0_33, %c0_34, %c0_35], %62 {strides = array<i32>} : memref<4x8x8xf32, #tpu.memory_space<vmem>>, vector<4x8x8xf32>,
      %c0_36 = arith.constant 0 : index
      %c0_37 = arith.constant 0 : index
      %c0_38 = arith.constant 0 : index
      %64 = vector.load %arg13[%c0_36, %c0_37, %c0_38] : memref<4x8x1xf32, #tpu.memory_space<vmem>>, vector<4x8x1xf32>
      tpu.vector_store %arg13[%c0_36, %c0_37, %c0_38], %44 {strides = array<i32>} : memref<4x8x1xf32, #tpu.memory_space<vmem>>, vector<4x8x1xf32>,
    } else {
    }
    %c0_i32_5 = arith.constant 0 : i32
    %10 = arith.cmpi eq, %arg2, %c0_i32_5 : i32
    %11 = arith.extui %10 : i1 to i32
    %c0_i32_6 = arith.constant 0 : i32
    %12 = arith.cmpi ne, %11, %c0_i32_6 : i32
    scf.if %12 {
      %c0 = arith.constant 0 : index
      %c0_7 = arith.constant 0 : index
      %c0_8 = arith.constant 0 : index
      %13 = vector.load %arg15[%c0, %c0_7, %c0_8] : memref<4x8x8xf32, #tpu.memory_space<vmem>>, vector<4x8x8xf32>
      %c0_9 = arith.constant 0 : index
      %c0_10 = arith.constant 0 : index
      %c0_11 = arith.constant 0 : index
      %14 = vector.load %arg14[%c0_9, %c0_10, %c0_11] : memref<4x8x1xf32, #tpu.memory_space<vmem>>, vector<4x8x1xf32>
      %15 = tpu.reciprocal %14 {approx = true} : vector<4x8x1xf32> -> vector<4x8x1xf32>
      %16 = vector.broadcast %15 : vector<4x8x1xf32> to vector<4x8x8xf32>
      %17 = arith.mulf %13, %16 : vector<4x8x8xf32>
      %18 = tpu.transpose %17, [1, 0, 2] : vector<4x8x8xf32> -> vector<8x4x8xf32>
      %19 = vector.shape_cast %18 : vector<8x4x8xf32> to vector<8x32xf32>
      %20 = arith.truncf %19 : vector<8x32xf32> to vector<8x32xbf16>
      %c0_12 = arith.constant 0 : index
      %c0_13 = arith.constant 0 : index
      %21 = vector.load %arg7[%c0_12, %c0_13] : memref<32x32xbf16, #tpu.memory_space<vmem>>, vector<32x32xbf16>
      %cst_14 = arith.constant dense<0.000000e+00> : vector<8x32xf32>
      %22 = tpu.matmul %20, %21, %cst_14 {dimension_numbers = #tpu.dot_dimension_numbers<[1], [0], [0], [1], [0, 0, 1, 1], [], []>} : vector<8x32xbf16>, vector<32x32xbf16>, vector<8x32xf32> -> vector<8x32xf32>
      %c0_15 = arith.constant 0 : index
      %c0_16 = arith.constant 0 : index
      %23 = vector.load %arg10[%c0_15, %c0_16] : memref<1x32xf32, #tpu.memory_space<vmem>>, vector<1x32xf32>
      %24 = vector.broadcast %23 : vector<1x32xf32> to vector<8x32xf32>
      %25 = arith.addf %22, %24 : vector<8x32xf32>
      %c0_17 = arith.constant 0 : index
      %c0_18 = arith.constant 0 : index
      %c0_19 = arith.constant 0 : index
      %26 = vector.load %arg11[%c0_17, %c0_18, %c0_19] : memref<1x8x32xf32, #tpu.memory_space<vmem>>, vector<1x8x32xf32>
      %27 = vector.shape_cast %26 : vector<1x8x32xf32> to vector<8x32xf32>
      %28 = vector.shape_cast %25 : vector<8x32xf32> to vector<1x8x32xf32>
      tpu.vector_store %arg11[%c0_17, %c0_18, %c0_19], %28 {strides = array<i32>} : memref<1x8x32xf32, #tpu.memory_space<vmem>>, vector<1x8x32xf32>,
    } else {
    }
    return
  }
  func.func @transform_0(%arg0: i32, %arg1: i32, %arg2: i32) -> (i32, i32, i32) {
    %c0_i32 = arith.constant 0 : i32
    %c0_i32_0 = arith.constant 0 : i32
    return %arg0, %arg1, %c0_i32 : i32, i32, i32
  }
  func.func @transform_1(%arg0: i32, %arg1: i32, %arg2: i32) -> (i32, i32, i32) {
    %c0_i32 = arith.constant 0 : i32
    %c0_i32_0 = arith.constant 0 : i32
    return %arg0, %arg2, %c0_i32 : i32, i32, i32
  }
  func.func @transform_2(%arg0: i32, %arg1: i32, %arg2: i32) -> (i32, i32) {
    %c0_i32 = arith.constant 0 : i32
    %c0_i32_0 = arith.constant 0 : i32
    %c0_i32_1 = arith.constant 0 : i32
    return %c0_i32, %c0_i32_0 : i32, i32
  }
  func.func @transform_3(%arg0: i32, %arg1: i32, %arg2: i32) -> (i32, i32) {
    %c0_i32 = arith.constant 0 : i32
    %c0_i32_0 = arith.constant 0 : i32
    %c0_i32_1 = arith.constant 0 : i32
    return %c0_i32, %c0_i32_0 : i32, i32
  }
  func.func @transform_4(%arg0: i32, %arg1: i32, %arg2: i32) -> (i32, i32) {
    %c0_i32 = arith.constant 0 : i32
    %c0_i32_0 = arith.constant 0 : i32
    %c0_i32_1 = arith.constant 0 : i32
    return %c0_i32, %c0_i32_0 : i32, i32
  }
  func.func @transform_5(%arg0: i32, %arg1: i32, %arg2: i32) -> (i32, i32) {
    %c0_i32 = arith.constant 0 : i32
    %c0_i32_0 = arith.constant 0 : i32
    %c0_i32_1 = arith.constant 0 : i32
    return %c0_i32, %c0_i32_0 : i32, i32
  }
  func.func @transform_6(%arg0: i32, %arg1: i32, %arg2: i32) -> (i32, i32) {
    %c0_i32 = arith.constant 0 : i32
    %c0_i32_0 = arith.constant 0 : i32
    %c0_i32_1 = arith.constant 0 : i32
    return %c0_i32, %c0_i32_0 : i32, i32
  }
  func.func @transform_7(%arg0: i32, %arg1: i32, %arg2: i32) -> (i32, i32) {
    %c0_i32 = arith.constant 0 : i32
    %c0_i32_0 = arith.constant 0 : i32
    %c0_i32_1 = arith.constant 0 : i32
    return %c0_i32, %c0_i32_0 : i32, i32
  }
  func.func @transform_8(%arg0: i32, %arg1: i32, %arg2: i32) -> (i32, i32, i32) {
    %c0_i32 = arith.constant 0 : i32
    %c0_i32_0 = arith.constant 0 : i32
    return %arg0, %arg1, %c0_i32 : i32, i32, i32
  }
}

</mosaic_0001>

<llo_original>
// kernel: tpu_custom_call.1
$region0: #{tpu_custom_call.1}
  #allocation0 [shape = 'u32[]', space=smem, size = 0x4, offset = 0x4, fixed_abs, tag = 'smem constant byte address 0x4 - core index']
  #allocation1 [shape = 'u32[144,128]{1,0:T(1,128)}', space=vmem, size = 0x12000, scoped, tag = 'internal scratch']
  #allocation2 [shape = 'bf16[4,8,8]{2,1,0:T(8,128)(2,1)}', space=vmem, size = 0x2000, scoped, tag = 'scratch operand']
  #allocation3 [shape = 'f32[4,8,1]{2,1,0:T(8,128)}', space=vmem, size = 0x4000, scoped, tag = 'scratch operand']
  #allocation4 [shape = 'f32[4,8,1]{2,1,0:T(8,128)}', space=vmem, size = 0x4000, scoped, tag = 'scratch operand']
  #allocation5 [shape = 'f32[4,8,8]{2,1,0:T(8,128)}', space=vmem, size = 0x4000, scoped, tag = 'scratch operand']
  %s0 = inlined_call_operand.hbm [shape: bf16[2,8,32], index: 0, kind: input, shape index: {}]
  %s1 = inlined_call_operand.hbm [shape: bf16[2,8,32], index: 1, kind: input, shape index: {}]
  %s2 = inlined_call_operand.hbm [shape: bf16[32,32], index: 2, kind: input, shape index: {}]
  %s3 = inlined_call_operand.hbm [shape: bf16[32,64], index: 3, kind: input, shape index: {}]
  %s4 = inlined_call_operand.hbm [shape: bf16[32,32], index: 4, kind: input, shape index: {}]
  %s5 = inlined_call_operand.hbm [shape: f32[1,32], index: 5, kind: input, shape index: {}]
  %s6 = inlined_call_operand.hbm [shape: f32[1,64], index: 6, kind: input, shape index: {}]
  %s7 = inlined_call_operand.hbm [shape: f32[1,32], index: 7, kind: input, shape index: {}]
  %s8 = inlined_call_operand.hbm [shape: f32[2,8,32], index: 8, kind: output, shape index: {}]
  %s9 = sld [smem:[#allocation0]]
  $region109: #{tpu_custom_call.1} parent=0
    _
  %s11 = ssub.s32 1, %s9
  %s12 = scalar_select 0, %s11, %s9
  $region1: #{tpu_custom_call.1} parent=0
    #allocation6 [shape = 'u8[4096]{0}', space=vmem, size = 0x1000, scoped, tag = 'input window, operand 0']
    #allocation7 [shape = 's32[2]{0}', space=sflag, size = 0x8, scoped, tag = 'scoped memory for tpu_custom_call.1']
    #allocation8 [shape = 's32[2]{0}', space=sflag, size = 0x8, scoped, tag = 'scoped memory for tpu_custom_call.1']
    #allocation9 [shape = 'u8[4096]{0}', space=vmem, size = 0x1000, scoped, tag = 'input window, operand 1']
    #allocation10 [shape = 's32[2]{0}', space=sflag, size = 0x8, scoped, tag = 'scoped memory for tpu_custom_call.1']
    #allocation11 [shape = 'u8[8192]{0}', space=vmem, size = 0x2000, scoped, tag = 'input window, operand 2, single buffered']
    #allocation12 [shape = 'u8[8192]{0}', space=vmem, size = 0x2000, scoped, tag = 'input window, operand 3, single buffered']
    #allocation13 [shape = 's32[1]{0}', space=sflag, size = 0x4, scoped, tag = 'scoped memory for tpu_custom_call.1']
    #allocation14 [shape = 'u8[8192]{0}', space=vmem, size = 0x2000, scoped, tag = 'input window, operand 4, single buffered']
    #allocation15 [shape = 'u8[512]{0}', space=vmem, size = 0x400, scoped, tag = 'input window, operand 5, single buffered']
    #allocation16 [shape = 's32[1]{0}', space=sflag, size = 0x4, scoped, tag = 'scoped memory for tpu_custom_call.1']
    #allocation17 [shape = 'u8[512]{0}', space=vmem, size = 0x400, scoped, tag = 'input window, operand 6, single buffered']
    #allocation18 [shape = 'u8[512]{0}', space=vmem, size = 0x400, scoped, tag = 'input window, operand 7, single buffered']
    #allocation19 [shape = 's32[1]{0}', space=sflag, size = 0x4, scoped, tag = 'scoped memory for tpu_custom_call.1']
    #allocation20 [shape = 'u8[8192]{0}', space=vmem, size = 0x2000, scoped, tag = 'output window, operand 0']
    %13 = vsyncpa [#allocation7], 0
    %s14 = scalar_lea.sflag [#allocation7], 1
    %15 = vsyncpa %s14, 0
    %16 = vsyncpa [#allocation10], 0
    %s17 = scalar_lea.sflag [#allocation10], 1
    %18 = vsyncpa %s17, 0
    %19 = vsyncpa [#allocation13], 0
    %20 = vsyncpa [#allocation16], 0
    %21 = vsyncpa [#allocation19], 0
    %22 = vsyncpa [#allocation8], 0
    %s23 = scalar_lea.sflag [#allocation8], 1
    %24 = vsyncpa %s23, 0
    loop: start=0, step=1, limit=4
    $region2: #{tpu_custom_call.1} parent=1 // loop_pre_header
      _
    $region3: #{tpu_custom_call.1} parent=1 // loop_header
      %s26 = sphi 0, %s30
      %p27 = scmp.ge.s32.totalorder %s26, 4
      %s33 = sphi 0, %s52
      %s34 = sphi 0, %s48
      %s35 = sphi 0, %s44
      %s36 = sphi 0, %s33
      %s37 = sphi 0, %s34
      %s38 = sphi 0, %s35
      %s39 = sphi 0, %s36
      %s40 = sphi 0, %s37
      %s41 = sphi 0, %s38
      %s57 = sphi 0, %s59
      %s60 = sphi 0, %s57
      %s61 = sphi 0, %s60
      %s77 = sphi 0, %s61
      %s85 = sphi 0, %s87
      %s88 = sphi 0, %s85
      %s89 = sphi 0, %s88
      %s105 = sphi 0, %s89
      %s109 = sphi 0, %s109
      %s111 = sphi 0, %s109
      %s112 = sphi 0, %s111
      %s126 = sphi 0, %s112
      %s130 = sphi 0, %s130
      %s132 = sphi 0, %s130
      %s133 = sphi 0, %s132
      %s147 = sphi 0, %s133
      %s151 = sphi 0, %s151
      %s153 = sphi 0, %s151
      %s154 = sphi 0, %s153
      %s168 = sphi 0, %s154
      %s172 = sphi 0, %s172
      %s174 = sphi 0, %s172
      %s175 = sphi 0, %s174
      %s189 = sphi 0, %s175
      %s193 = sphi 0, %s193
      %s195 = sphi 0, %s193
      %s196 = sphi 0, %s195
      %s210 = sphi 0, %s196
      %s214 = sphi 0, %s214
      %s216 = sphi 0, %s214
      %s217 = sphi 0, %s216
      %s231 = sphi 0, %s217
      %s239 = sphi 0, %s241
      %s242 = sphi 0, %s239
      %s243 = sphi 0, %s242
      %s259 = sphi 0, %s243
    $region4: #{tpu_custom_call.1} parent=1 // loop_header_branch
      %29 = sbr.rel (%p27) target = $region8
    $region5: #{tpu_custom_call.1} parent=1 // loop_body
      %s31 = ssub.s32 %s26, 1
      %s32 = ssub.s32 %s26, 2
      %s42 = sadd.s32 1, %s35
      %p43 = scmp.ge.s32.totalorder %s42, 1
      %s44 = scalar_select %p43, 0, %s42
      %s45 = sadd.s32 1, %s34
      %s46 = scalar_select %p43, %s45, %s34
      %p47 = scmp.ge.s32.totalorder %s46, 1
      %s48 = scalar_select %p47, 0, %s46
      %s49 = sadd.s32 1, %s33
      %s50 = scalar_select %p47, %s49, %s33
      %p51 = scmp.ge.s32.totalorder %s50, 2
      %s52 = scalar_select %p51, 0, %s50
      %s53 = ssub.s32 %s33, %s52
      %s54 = ssub.s32 %s34, %s48
      %s55 = sor.u32 %s53, %s54
      %p56 = scmp.eq.s32.totalorder %s55, 0
      %s58 = sadd.s32 %s57, 1
      %s59 = scalar_select %p56, %s57, %s58
      %p62 = pneg %p56
      %p63 = scmp.eq.s32.totalorder %s26, 1
      %p64 = por %p62, %p63
      %p65 = scmp.ne.s32.totalorder %s57, %s60
      %p66 = scmp.eq.s32.totalorder %s26, 0
      %p67 = por %p65, %p66
      %p68 = scmp.ne.s32.totalorder %s57, %s60
      %p69 = scmp.eq.s32.totalorder %s31, 1
      %p70 = por %p68, %p69
      %p71 = scmp.ne.s32.totalorder %s60, %s61
      %p72 = scmp.eq.s32.totalorder %s31, 0
      %p73 = por %p71, %p72
      %p74 = scmp.ne.s32.totalorder %s60, %s61
      %p75 = scmp.eq.s32.totalorder %s32, 1
      %p76 = por %p74, %p75
      %p78 = scmp.ne.s32.totalorder %s61, %s77
      %p79 = scmp.eq.s32.totalorder %s32, 0
      %p80 = por %p78, %p79
      %s81 = ssub.s32 %s33, %s52
      %s82 = ssub.s32 %s35, %s44
      %s83 = sor.u32 %s81, %s82
      %p84 = scmp.eq.s32.totalorder %s83, 0
      %s86 = sadd.s32 %s85, 1
      %s87 = scalar_select %p84, %s85, %s86
      %p90 = pneg %p84
      %p91 = scmp.eq.s32.totalorder %s26, 1
      %p92 = por %p90, %p91
      %p93 = scmp.ne.s32.totalorder %s85, %s88
      %p94 = scmp.eq.s32.totalorder %s26, 0
      %p95 = por %p93, %p94
      %p96 = scmp.ne.s32.totalorder %s85, %s88
      %p97 = scmp.eq.s32.totalorder %s31, 1
      %p98 = por %p96, %p97
      %p99 = scmp.ne.s32.totalorder %s88, %s89
      %p100 = scmp.eq.s32.totalorder %s31, 0
      %p101 = por %p99, %p100
      %p102 = scmp.ne.s32.totalorder %s88, %s89
      %p103 = scmp.eq.s32.totalorder %s32, 1
      %p104 = por %p102, %p103
      %p106 = scmp.ne.s32.totalorder %s89, %s105
      %p107 = scmp.eq.s32.totalorder %s32, 0
      %p108 = por %p106, %p107
      %s110 = sadd.s32 %s109, 1
      %p113 = scmp.eq.s32.totalorder %s26, 1
      %p114 = scmp.ne.s32.totalorder %s109, %s111
      %p115 = scmp.eq.s32.totalorder %s26, 0
      %p116 = por %p114, %p115
      %p117 = scmp.ne.s32.totalorder %s109, %s111
      %p118 = scmp.eq.s32.totalorder %s31, 1
      %p119 = por %p117, %p118
      %p120 = scmp.ne.s32.totalorder %s111, %s112
      %p121 = scmp.eq.s32.totalorder %s31, 0
      %p122 = por %p120, %p121
      %p123 = scmp.ne.s32.totalorder %s111, %s112
      %p124 = scmp.eq.s32.totalorder %s32, 1
      %p125 = por %p123, %p124
      %p127 = scmp.ne.s32.totalorder %s112, %s126
      %p128 = scmp.eq.s32.totalorder %s32, 0
      %p129 = por %p127, %p128
      %s131 = sadd.s32 %s130, 1
      %p134 = scmp.eq.s32.totalorder %s26, 1
      %p135 = scmp.ne.s32.totalorder %s130, %s132
      %p136 = scmp.eq.s32.totalorder %s26, 0
      %p137 = por %p135, %p136
      %p138 = scmp.ne.s32.totalorder %s130, %s132
      %p139 = scmp.eq.s32.totalorder %s31, 1
      %p140 = por %p138, %p139
      %p141 = scmp.ne.s32.totalorder %s132, %s133
      %p142 = scmp.eq.s32.totalorder %s31, 0
      %p143 = por %p141, %p142
      %p144 = scmp.ne.s32.totalorder %s132, %s133
      %p145 = scmp.eq.s32.totalorder %s32, 1
      %p146 = por %p144, %p145
      %p148 = scmp.ne.s32.totalorder %s133, %s147
      %p149 = scmp.eq.s32.totalorder %s32, 0
      %p150 = por %p148, %p149
      %s152 = sadd.s32 %s151, 1
      %p155 = scmp.eq.s32.totalorder %s26, 1
      %p156 = scmp.ne.s32.totalorder %s151, %s153
      %p157 = scmp.eq.s32.totalorder %s26, 0
      %p158 = por %p156, %p157
      %p159 = scmp.ne.s32.totalorder %s151, %s153
      %p160 = scmp.eq.s32.totalorder %s31, 1
      %p161 = por %p159, %p160
      %p162 = scmp.ne.s32.totalorder %s153, %s154
      %p163 = scmp.eq.s32.totalorder %s31, 0
      %p164 = por %p162, %p163
      %p165 = scmp.ne.s32.totalorder %s153, %s154
      %p166 = scmp.eq.s32.totalorder %s32, 1
      %p167 = por %p165, %p166
      %p169 = scmp.ne.s32.totalorder %s154, %s168
      %p170 = scmp.eq.s32.totalorder %s32, 0
      %p171 = por %p169, %p170
      %s173 = sadd.s32 %s172, 1
      %p176 = scmp.eq.s32.totalorder %s26, 1
      %p177 = scmp.ne.s32.totalorder %s172, %s174
      %p178 = scmp.eq.s32.totalorder %s26, 0
      %p179 = por %p177, %p178
      %p180 = scmp.ne.s32.totalorder %s172, %s174
      %p181 = scmp.eq.s32.totalorder %s31, 1
      %p182 = por %p180, %p181
      %p183 = scmp.ne.s32.totalorder %s174, %s175
      %p184 = scmp.eq.s32.totalorder %s31, 0
      %p185 = por %p183, %p184
      %p186 = scmp.ne.s32.totalorder %s174, %s175
      %p187 = scmp.eq.s32.totalorder %s32, 1
      %p188 = por %p186, %p187
      %p190 = scmp.ne.s32.totalorder %s175, %s189
      %p191 = scmp.eq.s32.totalorder %s32, 0
      %p192 = por %p190, %p191
      %s194 = sadd.s32 %s193, 1
      %p197 = scmp.eq.s32.totalorder %s26, 1
      %p198 = scmp.ne.s32.totalorder %s193, %s195
      %p199 = scmp.eq.s32.totalorder %s26, 0
      %p200 = por %p198, %p199
      %p201 = scmp.ne.s32.totalorder %s193, %s195
      %p202 = scmp.eq.s32.totalorder %s31, 1
      %p203 = por %p201, %p202
      %p204 = scmp.ne.s32.totalorder %s195, %s196
      %p205 = scmp.eq.s32.totalorder %s31, 0
      %p206 = por %p204, %p205
      %p207 = scmp.ne.s32.totalorder %s195, %s196
      %p208 = scmp.eq.s32.totalorder %s32, 1
      %p209 = por %p207, %p208
      %p211 = scmp.ne.s32.totalorder %s196, %s210
      %p212 = scmp.eq.s32.totalorder %s32, 0
      %p213 = por %p211, %p212
      %s215 = sadd.s32 %s214, 1
      %p218 = scmp.eq.s32.totalorder %s26, 1
      %p219 = scmp.ne.s32.totalorder %s214, %s216
      %p220 = scmp.eq.s32.totalorder %s26, 0
      %p221 = por %p219, %p220
      %p222 = scmp.ne.s32.totalorder %s214, %s216
      %p223 = scmp.eq.s32.totalorder %s31, 1
      %p224 = por %p222, %p223
      %p225 = scmp.ne.s32.totalorder %s216, %s217
      %p226 = scmp.eq.s32.totalorder %s31, 0
      %p227 = por %p225, %p226
      %p228 = scmp.ne.s32.totalorder %s216, %s217
      %p229 = scmp.eq.s32.totalorder %s32, 1
      %p230 = por %p228, %p229
      %p232 = scmp.ne.s32.totalorder %s217, %s231
      %p233 = scmp.eq.s32.totalorder %s32, 0
      %p234 = por %p232, %p233
      %s235 = ssub.s32 %s33, %s52
      %s236 = ssub.s32 %s34, %s48
      %s237 = sor.u32 %s235, %s236
      %p238 = scmp.eq.s32.totalorder %s237, 0
      %s240 = sadd.s32 %s239, 1
      %s241 = scalar_select %p238, %s239, %s240
      %p244 = pneg %p238
      %p245 = scmp.eq.s32.totalorder %s26, 1
      %p246 = por %p244, %p245
      %p247 = scmp.ne.s32.totalorder %s239, %s242
      %p248 = scmp.eq.s32.totalorder %s26, 0
      %p249 = por %p247, %p248
      %p250 = scmp.ne.s32.totalorder %s239, %s242
      %p251 = scmp.eq.s32.totalorder %s31, 1
      %p252 = por %p250, %p251
      %p253 = scmp.ne.s32.totalorder %s242, %s243
      %p254 = scmp.eq.s32.totalorder %s31, 0
      %p255 = por %p253, %p254
      %p256 = scmp.ne.s32.totalorder %s242, %s243
      %p257 = scmp.eq.s32.totalorder %s32, 1
      %p258 = por %p256, %p257
      %p260 = scmp.ne.s32.totalorder %s243, %s259
      %p261 = scmp.eq.s32.totalorder %s32, 0
      %p262 = por %p260, %p261
      %p263 = scmp.le.s32.totalorder 1, %s26
      %p264 = scmp.lt.s32.totalorder %s26, 3
      %p265 = pnand %p263, %p264
      %p266 = pneg %p265
      // Predicated region
      $region9: #{tpu_custom_call.1} parent=5 // pred_check
        _
      $region10: #{tpu_custom_call.1} parent=5 // pred_check_branch
        %268 = sbr.rel (%p265) target = $region12
      $region11: #{tpu_custom_call.1} parent=5 // pred_region
        %s269 = ssub.s32 %s26, 1
        // Predicated region
        $region13: #{tpu_custom_call.1} parent=11 // pred_check
          %p270 = pneg %p122
        $region14: #{tpu_custom_call.1} parent=11 // pred_check_branch
          %272 = sbr.rel (%p270) target = $region16
        $region15: #{tpu_custom_call.1} parent=11 // pred_region
          %s274 = ssub.s32 256, 256
          %275 = vsyncadd [#allocation10], %s274
          %s276 = sshll.u32 [#allocation11], 4
          %s277 = int_to_ptr.vmem [resolvable:$true] %s276
          %282 = dma.hbm_to_vmem [thread:$0]  %s2, 256, %s277, [#allocation10], 64, 64, 4
        $region16: #{tpu_custom_call.1} parent=11 // pred_fallthru
          _
        // Predicated region
        $region17: #{tpu_custom_call.1} parent=11 // pred_check
          %p283 = pneg %p143
        $region18: #{tpu_custom_call.1} parent=11 // pred_check_branch
          %285 = sbr.rel (%p283) target = $region20
        $region19: #{tpu_custom_call.1} parent=11 // pred_region
          %s287 = ssub.s32 256, 256
          %288 = vsyncadd [#allocation13], %s287
          %s289 = sshll.u32 [#allocation12], 4
          %s290 = int_to_ptr.vmem [resolvable:$true] %s289
          %295 = dma.hbm_to_vmem [thread:$0]  %s3, 256, %s290, [#allocation13], 64, 64, 4
        $region20: #{tpu_custom_call.1} parent=11 // pred_fallthru
          _
        // Predicated region
        $region21: #{tpu_custom_call.1} parent=11 // pred_check
          %p296 = pneg %p164
        $region22: #{tpu_custom_call.1} parent=11 // pred_check_branch
          %298 = sbr.rel (%p296) target = $region24
        $region23: #{tpu_custom_call.1} parent=11 // pred_region
          %s300 = ssub.s32 256, 256
          %301 = vsyncadd [#allocation13], %s300
          %s302 = sshll.u32 [#allocation14], 4
          %s303 = int_to_ptr.vmem [resolvable:$true] %s302
          %308 = dma.hbm_to_vmem [thread:$0]  %s4, 256, %s303, [#allocation13], 64, 64, 4
        $region24: #{tpu_custom_call.1} parent=11 // pred_fallthru
          _
        // Predicated region
        $region25: #{tpu_custom_call.1} parent=11 // pred_check
          %p309 = pneg %p185
        $region26: #{tpu_custom_call.1} parent=11 // pred_check_branch
          %311 = sbr.rel (%p309) target = $region28
        $region27: #{tpu_custom_call.1} parent=11 // pred_region
          %s313 = ssub.s32 16, 16
          %314 = vsyncadd [#allocation16], %s313
          %s316 = sshll.u32 [#allocation15], 4
          %s317 = int_to_ptr.vmem [resolvable:$true] %s316
          %319 = dma.hbm_to_vmem [thread:$0]  %s5, 16, %s317, [#allocation16]
        $region28: #{tpu_custom_call.1} parent=11 // pred_fallthru
          _
        // Predicated region
        $region29: #{tpu_custom_call.1} parent=11 // pred_check
          %p320 = pneg %p206
        $region30: #{tpu_custom_call.1} parent=11 // pred_check_branch
          %322 = sbr.rel (%p320) target = $region32
        $region31: #{tpu_custom_call.1} parent=11 // pred_region
          %s324 = ssub.s32 16, 16
          %325 = vsyncadd [#allocation16], %s324
          %s327 = sshll.u32 [#allocation17], 4
          %s328 = int_to_ptr.vmem [resolvable:$true] %s327
          %330 = dma.hbm_to_vmem [thread:$0]  %s6, 16, %s328, [#allocation16]
        $region32: #{tpu_custom_call.1} parent=11 // pred_fallthru
          _
        // Predicated region
        $region33: #{tpu_custom_call.1} parent=11 // pred_check
          %p331 = pneg %p227
        $region34: #{tpu_custom_call.1} parent=11 // pred_check_branch
          %333 = sbr.rel (%p331) target = $region36
        $region35: #{tpu_custom_call.1} parent=11 // pred_region
          %s335 = ssub.s32 16, 16
          %336 = vsyncadd [#allocation19], %s335
          %s338 = sshll.u32 [#allocation18], 4
          %s339 = int_to_ptr.vmem [resolvable:$true] %s338
          %341 = dma.hbm_to_vmem [thread:$0]  %s7, 16, %s339, [#allocation19]
        $region36: #{tpu_custom_call.1} parent=11 // pred_fallthru
          _
      $region12: #{tpu_custom_call.1} parent=5 // pred_fallthru
        _
      %p342 = scmp.lt.s32.totalorder %s26, 2
      // Predicated region
      $region37: #{tpu_custom_call.1} parent=5 // pred_check
        %p343 = pneg %p342
      $region38: #{tpu_custom_call.1} parent=5 // pred_check_branch
        %345 = sbr.rel (%p343) target = $region40
      $region39: #{tpu_custom_call.1} parent=5 // pred_region
        // Predicated region
        $region41: #{tpu_custom_call.1} parent=39 // pred_check
          %p346 = pneg %p67
        $region42: #{tpu_custom_call.1} parent=39 // pred_check_branch
          %348 = sbr.rel (%p346) target = $region44
        $region43: #{tpu_custom_call.1} parent=39 // pred_region
          %s349 = sand.u32 %s57, 1
          %s350 = scalar_lea.sflag [#allocation7], %s349
          %s351 = sand.u32 %s57, 1
          %s352 = smul.addr %s351, 4
          %s353 = scalar_lea.vmem [#allocation6], %s352
          %s355 = ssub.s32 64, 64
          %356 = vsyncadd %s350, %s355
          %s357 = sadd.s32 %s34, %s33
          %s358 = smul.addr %s357, 64
          %s359 = scalar_lea.hbm %s0, %s358
          %s361 = sshll.u32 %s353, 4
          %s362 = int_to_ptr.vmem [resolvable:$true] %s361
          %364 = dma.hbm_to_vmem [thread:$0]  %s359, 64, %s362, %s350
        $region44: #{tpu_custom_call.1} parent=39 // pred_fallthru
          _
        // Predicated region
        $region45: #{tpu_custom_call.1} parent=39 // pred_check
          %p365 = pneg %p95
        $region46: #{tpu_custom_call.1} parent=39 // pred_check_branch
          %367 = sbr.rel (%p365) target = $region48
        $region47: #{tpu_custom_call.1} parent=39 // pred_region
          %s368 = sand.u32 %s26, 1
          %s369 = scalar_lea.sflag [#allocation10], %s368
          %s370 = sand.u32 %s85, 1
          %s371 = smul.addr %s370, 4
          %s372 = scalar_lea.vmem [#allocation9], %s371
          %s374 = ssub.s32 64, 64
          %375 = vsyncadd %s369, %s374
          %s376 = sadd.s32 %s35, %s33
          %s377 = smul.addr %s376, 64
          %s378 = scalar_lea.hbm %s1, %s377
          %s380 = sshll.u32 %s372, 4
          %s381 = int_to_ptr.vmem [resolvable:$true] %s380
          %383 = dma.hbm_to_vmem [thread:$0]  %s378, 64, %s381, %s369
        $region48: #{tpu_custom_call.1} parent=39 // pred_fallthru
          _
      $region40: #{tpu_custom_call.1} parent=5 // pred_fallthru
        _
      %p384 = scmp.le.s32.totalorder 1, %s26
      %p385 = scmp.lt.s32.totalorder %s26, 3
      %p386 = pnand %p384, %p385
      %p387 = pneg %p386
      // Predicated region
      $region49: #{tpu_custom_call.1} parent=5 // pred_check
        _
      $region50: #{tpu_custom_call.1} parent=5 // pred_check_branch
        %389 = sbr.rel (%p386) target = $region52
      $region51: #{tpu_custom_call.1} parent=5 // pred_region
        %s390 = ssub.s32 %s26, 1
        %s391 = sand.u32 %s60, 1
        %s392 = scalar_lea.sflag [#allocation7], %s391
        %s393 = sand.u32 %s60, 1
        %s394 = smul.addr %s393, 4
        %s395 = scalar_lea.vmem [#allocation6], %s394
        // Predicated region
        $region53: #{tpu_custom_call.1} parent=51 // pred_check
          %p396 = pneg %p73
        $region54: #{tpu_custom_call.1} parent=51 // pred_check_branch
          %398 = sbr.rel (%p396) target = $region56
        $region55: #{tpu_custom_call.1} parent=51 // pred_region
          %399 = dma.done %s392, 64
        $region56: #{tpu_custom_call.1} parent=51 // pred_fallthru
          _
        %s400 = sand.u32 %s31, 1
        %s401 = scalar_lea.sflag [#allocation10], %s400
        %s402 = sand.u32 %s88, 1
        %s403 = smul.addr %s402, 4
        %s404 = scalar_lea.vmem [#allocation9], %s403
        // Predicated region
        $region57: #{tpu_custom_call.1} parent=51 // pred_check
          %p405 = pneg %p101
        $region58: #{tpu_custom_call.1} parent=51 // pred_check_branch
          %407 = sbr.rel (%p405) target = $region60
        $region59: #{tpu_custom_call.1} parent=51 // pred_region
          %408 = dma.done %s401, 64
        $region60: #{tpu_custom_call.1} parent=51 // pred_fallthru
          _
        // Predicated region
        $region61: #{tpu_custom_call.1} parent=51 // pred_check
          %p409 = pneg %p122
        $region62: #{tpu_custom_call.1} parent=51 // pred_check_branch
          %411 = sbr.rel (%p409) target = $region64
        $region63: #{tpu_custom_call.1} parent=51 // pred_region
          %412 = dma.done [#allocation10], 256
        $region64: #{tpu_custom_call.1} parent=51 // pred_fallthru
          _
        // Predicated region
        $region65: #{tpu_custom_call.1} parent=51 // pred_check
          %p413 = pneg %p143
        $region66: #{tpu_custom_call.1} parent=51 // pred_check_branch
          %415 = sbr.rel (%p413) target = $region68
        $region67: #{tpu_custom_call.1} parent=51 // pred_region
          %416 = dma.done [#allocation13], 256
        $region68: #{tpu_custom_call.1} parent=51 // pred_fallthru
          _
        // Predicated region
        $region69: #{tpu_custom_call.1} parent=51 // pred_check
          %p417 = pneg %p164
        $region70: #{tpu_custom_call.1} parent=51 // pred_check_branch
          %419 = sbr.rel (%p417) target = $region72
        $region71: #{tpu_custom_call.1} parent=51 // pred_region
          %420 = dma.done [#allocation13], 256
        $region72: #{tpu_custom_call.1} parent=51 // pred_fallthru
          _
        // Predicated region
        $region73: #{tpu_custom_call.1} parent=51 // pred_check
          %p421 = pneg %p185
        $region74: #{tpu_custom_call.1} parent=51 // pred_check_branch
          %423 = sbr.rel (%p421) target = $region76
        $region75: #{tpu_custom_call.1} parent=51 // pred_region
          %424 = dma.done [#allocation16], 16
        $region76: #{tpu_custom_call.1} parent=51 // pred_fallthru
          _
        // Predicated region
        $region77: #{tpu_custom_call.1} parent=51 // pred_check
          %p425 = pneg %p206
        $region78: #{tpu_custom_call.1} parent=51 // pred_check_branch
          %427 = sbr.rel (%p425) target = $region80
        $region79: #{tpu_custom_call.1} parent=51 // pred_region
          %428 = dma.done [#allocation16], 16
        $region80: #{tpu_custom_call.1} parent=51 // pred_fallthru
          _
        // Predicated region
        $region81: #{tpu_custom_call.1} parent=51 // pred_check
          %p429 = pneg %p227
        $region82: #{tpu_custom_call.1} parent=51 // pred_check_branch
          %431 = sbr.rel (%p429) target = $region84
        $region83: #{tpu_custom_call.1} parent=51 // pred_region
          %432 = dma.done [#allocation19], 16
        $region84: #{tpu_custom_call.1} parent=51 // pred_fallthru
          _
        %s433 = sand.u32 %s60, 1
        %s434 = scalar_lea.sflag [#allocation7], %s433
        %s435 = sand.u32 %s60, 1
        %s436 = smul.addr %s435, 4
        %s437 = scalar_lea.vmem [#allocation6], %s436
        %p438 = pneg %p73
        %p439 = pneg %p70
        %s440 = sand.u32 %s31, 1
        %s441 = scalar_lea.sflag [#allocation10], %s440
        %s442 = sand.u32 %s88, 1
        %s443 = smul.addr %s442, 4
        %s444 = scalar_lea.vmem [#allocation9], %s443
        %p445 = pneg %p101
        %p446 = pneg %p98
        %p447 = pneg %p122
        %p448 = pneg %p119
        %p449 = pneg %p143
        %p450 = pneg %p140
        %p451 = pneg %p164
        %p452 = pneg %p161
        %p453 = pneg %p185
        %p454 = pneg %p182
        %p455 = pneg %p206
        %p456 = pneg %p203
        %p457 = pneg %p227
        %p458 = pneg %p224
        %p459 = pneg %p255
        %p460 = pneg %p252
        %s461 = sand.u32 %s242, 1
        %s462 = scalar_lea.sflag [#allocation8], %s461
        %s463 = sand.u32 %s242, 1
        %s464 = smul.addr %s463, 8
        %s465 = scalar_lea.vmem [#allocation20], %s464
        %s467 = smul.u32 %s37, 8
        %s468 = smul.u32 %s38, 8
        %p469 = scmp.eq.s32.totalorder %s38, 0
        // Predicated region
        $region85: #{tpu_custom_call.1} parent=51 // pred_check
          %p470 = pneg %p469
        $region86: #{tpu_custom_call.1} parent=51 // pred_check_branch
          %472 = sbr.rel (%p470) target = $region88
        $region87: #{tpu_custom_call.1} parent=51 // pred_region
          %v473 = vld [vmem:[%s395] sm:$0xf]
          %v474 = vld [vmem:[#allocation11] sm:$0xf]
          %v475 = vld [vmem:[#allocation11 + $0x4] sm:$0xf]
          %v476 = vld [vmem:[#allocation11 + $0x8] sm:$0xf]
          %v477 = vld [vmem:[#allocation11 + $0xc] sm:$0xf]
          %v478 = vld [vmem:[#allocation15] sm:$0x1]
          %v480 = vlaneseq
          %v481 = vshrl.u32 %v480, 7
          %v482 = vsub.s32 0, %v481
          %v483 = vrot.slane %v478, %v482
          %v489 = vunpack.c.l.b16 %v474
          %v490 = vunpack.c.l.b16 %v475
          %v491 = vunpack.c.l.b16 %v476
          %v492 = vunpack.c.l.b16 %v477
          %v493 = vpack.c.b16 %v490, %v489
          %v494 = vpack.c.b16 %v492, %v491
          %vm497 = vcmask 261120
          %v499 = vsel %vm497, %v473, 0
          %501 = vmatprep.subr.bf16.mxu0 0
          %502 = vmatpush1.bf16.msra.mxu0 %v493
          %503 = vmatprep.subr.bf16.mxu0 0
          %504 = vmatpush1.bf16.msra.mxu0 %v494
          %505 = vmatprep.subr.bf16.mxu0 0
          %506 = vmatpush1.bf16.msra.mxu0 0
          %507 = vmatprep.subr.bf16.mxu0 0
          %508 = vmatpush1.bf16.msra.mxu0 0
          %509 = vmatprep.subr.bf16.mxu0 0
          %510 = vmatpush1.bf16.msra.mxu0 0
          %511 = vmatprep.subr.bf16.mxu0 0
          %512 = vmatpush1.bf16.msra.mxu0 0
          %513 = vmatprep.subr.bf16.mxu0 0
          %514 = vmatpush1.bf16.msra.mxu0 0
          %515 = vmatprep.subr.bf16.mxu0 0
          %516 = vmatpush1.bf16.msra.mxu0 0
          %517 = vmatprep.subr.bf16.mxu0 0
          %518 = vmatpush1.bf16.msra.mxu0 0
          %519 = vmatprep.subr.bf16.mxu0 0
          %520 = vmatpush1.bf16.msra.mxu0 0
          %521 = vmatprep.subr.bf16.mxu0 0
          %522 = vmatpush1.bf16.msra.mxu0 0
          %523 = vmatprep.subr.bf16.mxu0 0
          %524 = vmatpush1.bf16.msra.mxu0 0
          %525 = vmatprep.subr.bf16.mxu0 0
          %526 = vmatpush1.bf16.msra.mxu0 0
          %527 = vmatprep.subr.bf16.mxu0 0
          %528 = vmatpush1.bf16.msra.mxu0 0
          %529 = vmatprep.subr.bf16.mxu0 0
          %530 = vmatpush1.bf16.msra.mxu0 0
          %531 = vmatprep.subr.bf16.mxu0 0
          %532 = vmatpush1.bf16.msra.mxu0 0
          %533 = vmatprep.mubr.bf16.mxu0 0
          %534 = vmatmul.mubr.bf16.gmra.mrb[0].mxu0 %v499
          %v535 = vpop.f32.mrb[0].mxu0
          %v536 = vadd.f32 %v483, %v535
          %v537 = vpop.f32.mrb[0].mxu0
          %v538 = vpop.f32.mrb[0].mxu0
          %v539 = vpop.f32.mrb[0].mxu0
          %540 = vdwg.mxu0
          %v541 = vmul.f32 %v536, 0.35355338
          %543 = vrot.lane.b32.xlu0 %v541, 120
          %v544 = vpop.permute.xlu0 %543
          %546 = vrot.lane.b32.xlu0 %v541, 112
          %v547 = vpop.permute.xlu0 %546
          %549 = vrot.lane.b32.xlu0 %v541, 104
          %v550 = vpop.permute.xlu0 %549
          %v552 = vcombine.low %v541, %v547
          %v553 = vcombine.high %v541, %v547
          %v555 = vunpack.c.l.s4 1983009808
          %v556 = vunpack.c.0.s8 %v555
          %v557 = vlaneseq
          %v558 = vshrl.u32 %v557, 7
          %v559 = vsub.s32 %v556, %v558
          %v560 = vrot.slane %v552, %v559
          %v562 = vunpack.c.l.s4 1983009808
          %v563 = vunpack.c.0.s8 %v562
          %v564 = vlaneseq
          %v565 = vshrl.u32 %v564, 7
          %v566 = vsub.s32 %v563, %v565
          %v567 = vrot.slane %v553, %v566
          %v568 = vcombine.low %v544, %v550
          %v569 = vcombine.high %v544, %v550
          %v571 = vunpack.c.l.s4 1983009808
          %v572 = vunpack.c.0.s8 %v571
          %v573 = vlaneseq
          %v574 = vshrl.u32 %v573, 7
          %v575 = vsub.s32 %v572, %v574
          %v576 = vrot.slane %v568, %v575
          %v578 = vunpack.c.l.s4 1983009808
          %v579 = vunpack.c.0.s8 %v578
          %v580 = vlaneseq
          %v581 = vshrl.u32 %v580, 7
          %v582 = vsub.s32 %v579, %v581
          %v583 = vrot.slane %v569, %v582
          %v584 = vcombine.low %v560, %v576
          %v585 = vcombine.high %v560, %v576
          %v587 = vunpack.c.l.s4 1934713408
          %v588 = vunpack.c.0.s8 %v587
          %v589 = vlaneseq
          %v590 = vshrl.u32 %v589, 7
          %v591 = vsub.s32 %v588, %v590
          %v592 = vrot.slane %v584, %v591
          %v594 = vunpack.c.l.s4 1934713408
          %v595 = vunpack.c.0.s8 %v594
          %v596 = vlaneseq
          %v597 = vshrl.u32 %v596, 7
          %v598 = vsub.s32 %v595, %v597
          %v599 = vrot.slane %v585, %v598
          %v600 = vcombine.low %v567, %v583
          %v601 = vcombine.high %v567, %v583
          %v603 = vunpack.c.l.s4 1934713408
          %v604 = vunpack.c.0.s8 %v603
          %v605 = vlaneseq
          %v606 = vshrl.u32 %v605, 7
          %v607 = vsub.s32 %v604, %v606
          %v608 = vrot.slane %v600, %v607
          %v610 = vunpack.c.l.s4 1934713408
          %v611 = vunpack.c.0.s8 %v610
          %v612 = vlaneseq
          %v613 = vshrl.u32 %v612, 7
          %v614 = vsub.s32 %v611, %v613
          %v615 = vrot.slane %v601, %v614
          %v616 = vcombine.high %v592, 0.0
          %v617 = vcombine.high %v599, 0.0
          %v618 = vcombine.high %v608, 0.0
          %v619 = vcombine.high %v615, 0.0
          %v620 = vcombine.low %v592, %v599
          %v622 = vunpack.c.l.s4 1983009808
          %v623 = vunpack.c.0.s8 %v622
          %v624 = vlaneseq
          %v625 = vshrl.u32 %v624, 7
          %v626 = vsub.s32 %v623, %v625
          %v627 = vrot.slane %v620, %v626
          %v628 = vcombine.low %v616, %v617
          %v630 = vunpack.c.l.s4 1983009808
          %v631 = vunpack.c.0.s8 %v630
          %v632 = vlaneseq
          %v633 = vshrl.u32 %v632, 7
          %v634 = vsub.s32 %v631, %v633
          %v635 = vrot.slane %v628, %v634
          %v636 = vcombine.low %v608, %v615
          %v638 = vunpack.c.l.s4 1983009808
          %v639 = vunpack.c.0.s8 %v638
          %v640 = vlaneseq
          %v641 = vshrl.u32 %v640, 7
          %v642 = vsub.s32 %v639, %v641
          %v643 = vrot.slane %v636, %v642
          %v644 = vcombine.low %v618, %v619
          %v646 = vunpack.c.l.s4 1983009808
          %v647 = vunpack.c.0.s8 %v646
          %v648 = vlaneseq
          %v649 = vshrl.u32 %v648, 7
          %v650 = vsub.s32 %v647, %v649
          %v651 = vrot.slane %v644, %v650
          %v652 = vcombine.low %v627, %v635
          %v653 = vcombine.high %v627, %v635
          %v655 = vunpack.c.l.s4 1934713408
          %v656 = vunpack.c.0.s8 %v655
          %v657 = vlaneseq
          %v658 = vshrl.u32 %v657, 7
          %v659 = vsub.s32 %v656, %v658
          %v660 = vrot.slane %v652, %v659
          %v662 = vunpack.c.l.s4 1934713408
          %v663 = vunpack.c.0.s8 %v662
          %v664 = vlaneseq
          %v665 = vshrl.u32 %v664, 7
          %v666 = vsub.s32 %v663, %v665
          %v667 = vrot.slane %v653, %v666
          %v668 = vcombine.low %v643, %v651
          %v669 = vcombine.high %v643, %v651
          %v671 = vunpack.c.l.s4 1934713408
          %v672 = vunpack.c.0.s8 %v671
          %v673 = vlaneseq
          %v674 = vshrl.u32 %v673, 7
          %v675 = vsub.s32 %v672, %v674
          %v676 = vrot.slane %v668, %v675
          %v678 = vunpack.c.l.s4 1934713408
          %v679 = vunpack.c.0.s8 %v678
          %v680 = vlaneseq
          %v681 = vshrl.u32 %v680, 7
          %v682 = vsub.s32 %v679, %v681
          %v683 = vrot.slane %v669, %v682
          %v684 = vcombine.low %v660, %v676
          %v685 = vcombine.high %v660, %v676
          %v686 = vcombine.low %v667, %v683
          %v687 = vcombine.high %v667, %v683
          %v688 = vpack.c.bf16 %v684, %v684
          %v689 = vpack.c.bf16 %v685, %v685
          %v690 = vpack.c.bf16 %v686, %v686
          %v691 = vpack.c.bf16 %v687, %v687
          %vm692 = vcmask 60416
          %693 = vst.msk [vmem:[#allocation2] sm:$0xf] %vm692, %v688
          %694 = vst.msk [vmem:[#allocation2 + $0x4] sm:$0xf] %vm692, %v689
          %695 = vst.msk [vmem:[#allocation2 + $0x8] sm:$0xf] %vm692, %v690
          %696 = vst.msk [vmem:[#allocation2 + $0xc] sm:$0xf] %vm692, %v691
          %vm697 = vcmask 7168
          %698 = vst.msk [vmem:[#allocation3] sm:$0xff] %vm697, -1e+30
          %699 = vst.msk [vmem:[#allocation3 + $0x8] sm:$0xff] %vm697, -1e+30
          %700 = vst.msk [vmem:[#allocation3 + $0x10] sm:$0xff] %vm697, -1e+30
          %701 = vst.msk [vmem:[#allocation3 + $0x18] sm:$0xff] %vm697, -1e+30
          %702 = vst.msk [vmem:[#allocation4] sm:$0xff] %vm697, 0.0
          %703 = vst.msk [vmem:[#allocation4 + $0x8] sm:$0xff] %vm697, 0.0
          %704 = vst.msk [vmem:[#allocation4 + $0x10] sm:$0xff] %vm697, 0.0
          %705 = vst.msk [vmem:[#allocation4 + $0x18] sm:$0xff] %vm697, 0.0
          %vm706 = vcmask 64512
          %707 = vst.msk [vmem:[#allocation5] sm:$0xff] %vm706, 0.0
          %708 = vst.msk [vmem:[#allocation5 + $0x8] sm:$0xff] %vm706, 0.0
          %709 = vst.msk [vmem:[#allocation5 + $0x10] sm:$0xff] %vm706, 0.0
          %710 = vst.msk [vmem:[#allocation5 + $0x18] sm:$0xff] %vm706, 0.0
        $region88: #{tpu_custom_call.1} parent=51 // pred_fallthru
          _
        %s711 = sadd.s32 %s467, 7
        %p712 = scmp.le.s32.totalorder %s468, %s711
        // Predicated region
        $region89: #{tpu_custom_call.1} parent=51 // pred_check
          %p713 = pneg %p712
        $region90: #{tpu_custom_call.1} parent=51 // pred_check_branch
          %715 = sbr.rel (%p713) target = $region92
        $region91: #{tpu_custom_call.1} parent=51 // pred_region
          %v716 = vld [vmem:[%s404] sm:$0xf]
          %v717 = vld [vmem:[#allocation12] sm:$0xf]
          %v718 = vld [vmem:[#allocation12 + $0x4] sm:$0xf]
          %v719 = vld [vmem:[#allocation12 + $0x8] sm:$0xf]
          %v720 = vld [vmem:[#allocation12 + $0xc] sm:$0xf]
          %v721 = vld [vmem:[#allocation17] sm:$0x1]
          %v723 = vlaneseq
          %v724 = vshrl.u32 %v723, 7
          %v725 = vsub.s32 0, %v724
          %v726 = vrot.slane %v721, %v725
          %v732 = vunpack.c.l.b16 %v717
          %v733 = vunpack.c.l.b16 %v718
          %v734 = vunpack.c.l.b16 %v719
          %v735 = vunpack.c.l.b16 %v720
          %v736 = vpack.c.b16 %v733, %v732
          %v737 = vpack.c.b16 %v735, %v734
          %vm740 = vcmask 261120
          %v742 = vsel %vm740, %v716, 0
          %744 = vmatprep.subr.bf16.mxu0 0
          %745 = vmatpush1.bf16.msra.mxu0 %v736
          %746 = vmatprep.subr.bf16.mxu0 0
          %747 = vmatpush1.bf16.msra.mxu0 %v737
          %748 = vmatprep.subr.bf16.mxu0 0
          %749 = vmatpush1.bf16.msra.mxu0 0
          %750 = vmatprep.subr.bf16.mxu0 0
          %751 = vmatpush1.bf16.msra.mxu0 0
          %752 = vmatprep.subr.bf16.mxu0 0
          %753 = vmatpush1.bf16.msra.mxu0 0
          %754 = vmatprep.subr.bf16.mxu0 0
          %755 = vmatpush1.bf16.msra.mxu0 0
          %756 = vmatprep.subr.bf16.mxu0 0
          %757 = vmatpush1.bf16.msra.mxu0 0
          %758 = vmatprep.subr.bf16.mxu0 0
          %759 = vmatpush1.bf16.msra.mxu0 0
          %760 = vmatprep.subr.bf16.mxu0 0
          %761 = vmatpush1.bf16.msra.mxu0 0
          %762 = vmatprep.subr.bf16.mxu0 0
          %763 = vmatpush1.bf16.msra.mxu0 0
          %764 = vmatprep.subr.bf16.mxu0 0
          %765 = vmatpush1.bf16.msra.mxu0 0
          %766 = vmatprep.subr.bf16.mxu0 0
          %767 = vmatpush1.bf16.msra.mxu0 0
          %768 = vmatprep.subr.bf16.mxu0 0
          %769 = vmatpush1.bf16.msra.mxu0 0
          %770 = vmatprep.subr.bf16.mxu0 0
          %771 = vmatpush1.bf16.msra.mxu0 0
          %772 = vmatprep.subr.bf16.mxu0 0
          %773 = vmatpush1.bf16.msra.mxu0 0
          %774 = vmatprep.subr.bf16.mxu0 0
          %775 = vmatpush1.bf16.msra.mxu0 0
          %776 = vmatprep.mubr.bf16.mxu0 0
          %777 = vmatmul.mubr.bf16.gmra.mrb[0].mxu0 %v742
          %v778 = vpop.f32.mrb[0].mxu0
          %v779 = vadd.f32 %v726, %v778
          %v780 = vpop.f32.mrb[0].mxu0
          %v781 = vpop.f32.mrb[0].mxu0
          %v782 = vpop.f32.mrb[0].mxu0
          %783 = vdwg.mxu0
          %785 = vrot.lane.b32.xlu0 %v779, 120
          %v786 = vpop.permute.xlu0 %785
          %788 = vrot.lane.b32.xlu0 %v779, 112
          %v789 = vpop.permute.xlu0 %788
          %791 = vrot.lane.b32.xlu0 %v779, 104
          %v792 = vpop.permute.xlu0 %791
          %v794 = vcombine.low %v779, %v789
          %v795 = vcombine.high %v779, %v789
          %v797 = vunpack.c.l.s4 1983009808
          %v798 = vunpack.c.0.s8 %v797
          %v799 = vlaneseq
          %v800 = vshrl.u32 %v799, 7
          %v801 = vsub.s32 %v798, %v800
          %v802 = vrot.slane %v794, %v801
          %v804 = vunpack.c.l.s4 1983009808
          %v805 = vunpack.c.0.s8 %v804
          %v806 = vlaneseq
          %v807 = vshrl.u32 %v806, 7
          %v808 = vsub.s32 %v805, %v807
          %v809 = vrot.slane %v795, %v808
          %v810 = vcombine.low %v786, %v792
          %v811 = vcombine.high %v786, %v792
          %v813 = vunpack.c.l.s4 1983009808
          %v814 = vunpack.c.0.s8 %v813
          %v815 = vlaneseq
          %v816 = vshrl.u32 %v815, 7
          %v817 = vsub.s32 %v814, %v816
          %v818 = vrot.slane %v810, %v817
          %v820 = vunpack.c.l.s4 1983009808
          %v821 = vunpack.c.0.s8 %v820
          %v822 = vlaneseq
          %v823 = vshrl.u32 %v822, 7
          %v824 = vsub.s32 %v821, %v823
          %v825 = vrot.slane %v811, %v824
          %v826 = vcombine.low %v802, %v818
          %v827 = vcombine.high %v802, %v818
          %v829 = vunpack.c.l.s4 1934713408
          %v830 = vunpack.c.0.s8 %v829
          %v831 = vlaneseq
          %v832 = vshrl.u32 %v831, 7
          %v833 = vsub.s32 %v830, %v832
          %v834 = vrot.slane %v826, %v833
          %v836 = vunpack.c.l.s4 1934713408
          %v837 = vunpack.c.0.s8 %v836
          %v838 = vlaneseq
          %v839 = vshrl.u32 %v838, 7
          %v840 = vsub.s32 %v837, %v839
          %v841 = vrot.slane %v827, %v840
          %v842 = vcombine.low %v809, %v825
          %v843 = vcombine.high %v809, %v825
          %v845 = vunpack.c.l.s4 1934713408
          %v846 = vunpack.c.0.s8 %v845
          %v847 = vlaneseq
          %v848 = vshrl.u32 %v847, 7
          %v849 = vsub.s32 %v846, %v848
          %v850 = vrot.slane %v842, %v849
          %v852 = vunpack.c.l.s4 1934713408
          %v853 = vunpack.c.0.s8 %v852
          %v854 = vlaneseq
          %v855 = vshrl.u32 %v854, 7
          %v856 = vsub.s32 %v853, %v855
          %v857 = vrot.slane %v843, %v856
          %v858 = vcombine.high %v834, 0.0
          %v859 = vcombine.high %v841, 0.0
          %v860 = vcombine.high %v850, 0.0
          %v861 = vcombine.high %v857, 0.0
          %v862 = vcombine.low %v834, %v841
          %v864 = vunpack.c.l.s4 1983009808
          %v865 = vunpack.c.0.s8 %v864
          %v866 = vlaneseq
          %v867 = vshrl.u32 %v866, 7
          %v868 = vsub.s32 %v865, %v867
          %v869 = vrot.slane %v862, %v868
          %v870 = vcombine.low %v858, %v859
          %v872 = vunpack.c.l.s4 1983009808
          %v873 = vunpack.c.0.s8 %v872
          %v874 = vlaneseq
          %v875 = vshrl.u32 %v874, 7
          %v876 = vsub.s32 %v873, %v875
          %v877 = vrot.slane %v870, %v876
          %v878 = vcombine.low %v850, %v857
          %v880 = vunpack.c.l.s4 1983009808
          %v881 = vunpack.c.0.s8 %v880
          %v882 = vlaneseq
          %v883 = vshrl.u32 %v882, 7
          %v884 = vsub.s32 %v881, %v883
          %v885 = vrot.slane %v878, %v884
          %v886 = vcombine.low %v860, %v861
          %v888 = vunpack.c.l.s4 1983009808
          %v889 = vunpack.c.0.s8 %v888
          %v890 = vlaneseq
          %v891 = vshrl.u32 %v890, 7
          %v892 = vsub.s32 %v889, %v891
          %v893 = vrot.slane %v886, %v892
          %v894 = vcombine.low %v869, %v877
          %v895 = vcombine.high %v869, %v877
          %v897 = vunpack.c.l.s4 1934713408
          %v898 = vunpack.c.0.s8 %v897
          %v899 = vlaneseq
          %v900 = vshrl.u32 %v899, 7
          %v901 = vsub.s32 %v898, %v900
          %v902 = vrot.slane %v894, %v901
          %v904 = vunpack.c.l.s4 1934713408
          %v905 = vunpack.c.0.s8 %v904
          %v906 = vlaneseq
          %v907 = vshrl.u32 %v906, 7
          %v908 = vsub.s32 %v905, %v907
          %v909 = vrot.slane %v895, %v908
          %v910 = vcombine.low %v885, %v893
          %v911 = vcombine.high %v885, %v893
          %v913 = vunpack.c.l.s4 1934713408
          %v914 = vunpack.c.0.s8 %v913
          %v915 = vlaneseq
          %v916 = vshrl.u32 %v915, 7
          %v917 = vsub.s32 %v914, %v916
          %v918 = vrot.slane %v910, %v917
          %v920 = vunpack.c.l.s4 1934713408
          %v921 = vunpack.c.0.s8 %v920
          %v922 = vlaneseq
          %v923 = vshrl.u32 %v922, 7
          %v924 = vsub.s32 %v921, %v923
          %v925 = vrot.slane %v911, %v924
          %v926 = vcombine.low %v902, %v918
          %v927 = vcombine.high %v902, %v918
          %v928 = vcombine.low %v909, %v925
          %v929 = vcombine.high %v909, %v925
          %930 = vrot.lane.b32.xlu0 %v779, 96
          %v931 = vpop.permute.xlu0 %930
          %932 = vrot.lane.b32.xlu0 %v786, 96
          %v933 = vpop.permute.xlu0 %932
          %934 = vrot.lane.b32.xlu0 %v789, 96
          %v935 = vpop.permute.xlu0 %934
          %936 = vrot.lane.b32.xlu0 %v792, 96
          %v937 = vpop.permute.xlu0 %936
          %v942 = vcombine.low %v931, %v935
          %v943 = vcombine.high %v931, %v935
          %v945 = vunpack.c.l.s4 1983009808
          %v946 = vunpack.c.0.s8 %v945
          %v947 = vlaneseq
          %v948 = vshrl.u32 %v947, 7
          %v949 = vsub.s32 %v946, %v948
          %v950 = vrot.slane %v942, %v949
          %v952 = vunpack.c.l.s4 1983009808
          %v953 = vunpack.c.0.s8 %v952
          %v954 = vlaneseq
          %v955 = vshrl.u32 %v954, 7
          %v956 = vsub.s32 %v953, %v955
          %v957 = vrot.slane %v943, %v956
          %v958 = vcombine.low %v933, %v937
          %v959 = vcombine.high %v933, %v937
          %v961 = vunpack.c.l.s4 1983009808
          %v962 = vunpack.c.0.s8 %v961
          %v963 = vlaneseq
          %v964 = vshrl.u32 %v963, 7
          %v965 = vsub.s32 %v962, %v964
          %v966 = vrot.slane %v958, %v965
          %v968 = vunpack.c.l.s4 1983009808
          %v969 = vunpack.c.0.s8 %v968
          %v970 = vlaneseq
          %v971 = vshrl.u32 %v970, 7
          %v972 = vsub.s32 %v969, %v971
          %v973 = vrot.slane %v959, %v972
          %v974 = vcombine.low %v950, %v966
          %v975 = vcombine.high %v950, %v966
          %v977 = vunpack.c.l.s4 1934713408
          %v978 = vunpack.c.0.s8 %v977
          %v979 = vlaneseq
          %v980 = vshrl.u32 %v979, 7
          %v981 = vsub.s32 %v978, %v980
          %v982 = vrot.slane %v974, %v981
          %v984 = vunpack.c.l.s4 1934713408
          %v985 = vunpack.c.0.s8 %v984
          %v986 = vlaneseq
          %v987 = vshrl.u32 %v986, 7
          %v988 = vsub.s32 %v985, %v987
          %v989 = vrot.slane %v975, %v988
          %v990 = vcombine.low %v957, %v973
          %v991 = vcombine.high %v957, %v973
          %v993 = vunpack.c.l.s4 1934713408
          %v994 = vunpack.c.0.s8 %v993
          %v995 = vlaneseq
          %v996 = vshrl.u32 %v995, 7
          %v997 = vsub.s32 %v994, %v996
          %v998 = vrot.slane %v990, %v997
          %v1000 = vunpack.c.l.s4 1934713408
          %v1001 = vunpack.c.0.s8 %v1000
          %v1002 = vlaneseq
          %v1003 = vshrl.u32 %v1002, 7
          %v1004 = vsub.s32 %v1001, %v1003
          %v1005 = vrot.slane %v991, %v1004
          %v1006 = vcombine.high %v982, 0.0
          %v1007 = vcombine.high %v989, 0.0
          %v1008 = vcombine.high %v998, 0.0
          %v1009 = vcombine.high %v1005, 0.0
          %v1010 = vcombine.low %v982, %v989
          %v1012 = vunpack.c.l.s4 1983009808
          %v1013 = vunpack.c.0.s8 %v1012
          %v1014 = vlaneseq
          %v1015 = vshrl.u32 %v1014, 7
          %v1016 = vsub.s32 %v1013, %v1015
          %v1017 = vrot.slane %v1010, %v1016
          %v1018 = vcombine.low %v1006, %v1007
          %v1020 = vunpack.c.l.s4 1983009808
          %v1021 = vunpack.c.0.s8 %v1020
          %v1022 = vlaneseq
          %v1023 = vshrl.u32 %v1022, 7
          %v1024 = vsub.s32 %v1021, %v1023
          %v1025 = vrot.slane %v1018, %v1024
          %v1026 = vcombine.low %v998, %v1005
          %v1028 = vunpack.c.l.s4 1983009808
          %v1029 = vunpack.c.0.s8 %v1028
          %v1030 = vlaneseq
          %v1031 = vshrl.u32 %v1030, 7
          %v1032 = vsub.s32 %v1029, %v1031
          %v1033 = vrot.slane %v1026, %v1032
          %v1034 = vcombine.low %v1008, %v1009
          %v1036 = vunpack.c.l.s4 1983009808
          %v1037 = vunpack.c.0.s8 %v1036
          %v1038 = vlaneseq
          %v1039 = vshrl.u32 %v1038, 7
          %v1040 = vsub.s32 %v1037, %v1039
          %v1041 = vrot.slane %v1034, %v1040
          %v1042 = vcombine.low %v1017, %v1025
          %v1043 = vcombine.high %v1017, %v1025
          %v1045 = vunpack.c.l.s4 1934713408
          %v1046 = vunpack.c.0.s8 %v1045
          %v1047 = vlaneseq
          %v1048 = vshrl.u32 %v1047, 7
          %v1049 = vsub.s32 %v1046, %v1048
          %v1050 = vrot.slane %v1042, %v1049
          %v1052 = vunpack.c.l.s4 1934713408
          %v1053 = vunpack.c.0.s8 %v1052
          %v1054 = vlaneseq
          %v1055 = vshrl.u32 %v1054, 7
          %v1056 = vsub.s32 %v1053, %v1055
          %v1057 = vrot.slane %v1043, %v1056
          %v1058 = vcombine.low %v1033, %v1041
          %v1059 = vcombine.high %v1033, %v1041
          %v1061 = vunpack.c.l.s4 1934713408
          %v1062 = vunpack.c.0.s8 %v1061
          %v1063 = vlaneseq
          %v1064 = vshrl.u32 %v1063, 7
          %v1065 = vsub.s32 %v1062, %v1064
          %v1066 = vrot.slane %v1058, %v1065
          %v1068 = vunpack.c.l.s4 1934713408
          %v1069 = vunpack.c.0.s8 %v1068
          %v1070 = vlaneseq
          %v1071 = vshrl.u32 %v1070, 7
          %v1072 = vsub.s32 %v1069, %v1071
          %v1073 = vrot.slane %v1059, %v1072
          %v1074 = vcombine.low %v1050, %v1066
          %v1075 = vcombine.high %v1050, %v1066
          %v1076 = vcombine.low %v1057, %v1073
          %v1077 = vcombine.high %v1057, %v1073
          %v1078 = vld [vmem:[#allocation2] sm:$0xf]
          %v1079 = vld [vmem:[#allocation2 + $0x4] sm:$0xf]
          %v1080 = vld [vmem:[#allocation2 + $0x8] sm:$0xf]
          %v1081 = vld [vmem:[#allocation2 + $0xc] sm:$0xf]
          %v1082 = vpack.c.bf16 %v926, %v926
          %v1083 = vpack.c.bf16 %v927, %v927
          %v1084 = vpack.c.bf16 %v928, %v928
          %v1085 = vpack.c.bf16 %v929, %v929
          %vm1086 = vcmask 64512
          %v1088 = vsel %vm1086, %v1078, 0
          %v1091 = vsel %vm1086, %v1082, 0
          %1093 = vmatprep.subr.bf16.mxu0 0
          %1094 = vmatpush1.bf16.xpose.msra.mxu0 %v1091
          %1095 = vmatprep.subr.bf16.mxu0 0
          %1096 = vmatpush1.bf16.xpose.msra.mxu0 0
          %1097 = vmatprep.subr.bf16.mxu0 0
          %1098 = vmatpush1.bf16.xpose.msra.mxu0 0
          %1099 = vmatprep.subr.bf16.mxu0 0
          %1100 = vmatpush1.bf16.xpose.msra.mxu0 0
          %1101 = vmatprep.subr.bf16.mxu0 0
          %1102 = vmatpush1.bf16.xpose.msra.mxu0 0
          %1103 = vmatprep.subr.bf16.mxu0 0
          %1104 = vmatpush1.bf16.xpose.msra.mxu0 0
          %1105 = vmatprep.subr.bf16.mxu0 0
          %1106 = vmatpush1.bf16.xpose.msra.mxu0 0
          %1107 = vmatprep.subr.bf16.mxu0 0
          %1108 = vmatpush1.bf16.xpose.msra.mxu0 0
          %1109 = vmatprep.subr.bf16.mxu0 0
          %1110 = vmatpush1.bf16.xpose.msra.mxu0 0
          %1111 = vmatprep.subr.bf16.mxu0 0
          %1112 = vmatpush1.bf16.xpose.msra.mxu0 0
          %1113 = vmatprep.subr.bf16.mxu0 0
          %1114 = vmatpush1.bf16.xpose.msra.mxu0 0
          %1115 = vmatprep.subr.bf16.mxu0 0
          %1116 = vmatpush1.bf16.xpose.msra.mxu0 0
          %1117 = vmatprep.subr.bf16.mxu0 0
          %1118 = vmatpush1.bf16.xpose.msra.mxu0 0
          %1119 = vmatprep.subr.bf16.mxu0 0
          %1120 = vmatpush1.bf16.xpose.msra.mxu0 0
          %1121 = vmatprep.subr.bf16.mxu0 0
          %1122 = vmatpush1.bf16.xpose.msra.mxu0 0
          %1123 = vmatprep.subr.bf16.mxu0 0
          %1124 = vmatpush1.bf16.xpose.msra.mxu0 0
          %1125 = vmatprep.mubr.bf16.mxu0 0
          %1126 = vmatmul.mubr.bf16.gmra.mrb[0].mxu0 %v1088
          %v1127 = vpop.f32.mrb[0].mxu0
          %v1128 = vadd.f32 0.0, %v1127
          %v1129 = vpop.f32.mrb[0].mxu0
          %v1130 = vpop.f32.mrb[0].mxu0
          %v1131 = vpop.f32.mrb[0].mxu0
          %1132 = vdwg.mxu0
          %v1134 = vsel %vm1086, %v1079, 0
          %v1137 = vsel %vm1086, %v1083, 0
          %1139 = vmatprep.subr.bf16.mxu0 0
          %1140 = vmatpush1.bf16.xpose.msra.mxu0 %v1137
          %1141 = vmatprep.subr.bf16.mxu0 0
          %1142 = vmatpush1.bf16.xpose.msra.mxu0 0
          %1143 = vmatprep.subr.bf16.mxu0 0
          %1144 = vmatpush1.bf16.xpose.msra.mxu0 0
          %1145 = vmatprep.subr.bf16.mxu0 0
          %1146 = vmatpush1.bf16.xpose.msra.mxu0 0
          %1147 = vmatprep.subr.bf16.mxu0 0
          %1148 = vmatpush1.bf16.xpose.msra.mxu0 0
          %1149 = vmatprep.subr.bf16.mxu0 0
          %1150 = vmatpush1.bf16.xpose.msra.mxu0 0
          %1151 = vmatprep.subr.bf16.mxu0 0
          %1152 = vmatpush1.bf16.xpose.msra.mxu0 0
          %1153 = vmatprep.subr.bf16.mxu0 0
          %1154 = vmatpush1.bf16.xpose.msra.mxu0 0
          %1155 = vmatprep.subr.bf16.mxu0 0
          %1156 = vmatpush1.bf16.xpose.msra.mxu0 0
          %1157 = vmatprep.subr.bf16.mxu0 0
          %1158 = vmatpush1.bf16.xpose.msra.mxu0 0
          %1159 = vmatprep.subr.bf16.mxu0 0
          %1160 = vmatpush1.bf16.xpose.msra.mxu0 0
          %1161 = vmatprep.subr.bf16.mxu0 0
          %1162 = vmatpush1.bf16.xpose.msra.mxu0 0
          %1163 = vmatprep.subr.bf16.mxu0 0
          %1164 = vmatpush1.bf16.xpose.msra.mxu0 0
          %1165 = vmatprep.subr.bf16.mxu0 0
          %1166 = vmatpush1.bf16.xpose.msra.mxu0 0
          %1167 = vmatprep.subr.bf16.mxu0 0
          %1168 = vmatpush1.bf16.xpose.msra.mxu0 0
          %1169 = vmatprep.subr.bf16.mxu0 0
          %1170 = vmatpush1.bf16.xpose.msra.mxu0 0
          %1171 = vmatprep.mubr.bf16.mxu0 0
          %1172 = vmatmul.mubr.bf16.gmra.mrb[0].mxu0 %v1134
          %v1173 = vpop.f32.mrb[0].mxu0
          %v1174 = vadd.f32 0.0, %v1173
          %v1175 = vpop.f32.mrb[0].mxu0
          %v1176 = vpop.f32.mrb[0].mxu0
          %v1177 = vpop.f32.mrb[0].mxu0
          %1178 = vdwg.mxu0
          %v1180 = vsel %vm1086, %v1080, 0
          %v1183 = vsel %vm1086, %v1084, 0
          %1185 = vmatprep.subr.bf16.mxu0 0
          %1186 = vmatpush1.bf16.xpose.msra.mxu0 %v1183
          %1187 = vmatprep.subr.bf16.mxu0 0
          %1188 = vmatpush1.bf16.xpose.msra.mxu0 0
          %1189 = vmatprep.subr.bf16.mxu0 0
          %1190 = vmatpush1.bf16.xpose.msra.mxu0 0
          %1191 = vmatprep.subr.bf16.mxu0 0
          %1192 = vmatpush1.bf16.xpose.msra.mxu0 0
          %1193 = vmatprep.subr.bf16.mxu0 0
          %1194 = vmatpush1.bf16.xpose.msra.mxu0 0
          %1195 = vmatprep.subr.bf16.mxu0 0
          %1196 = vmatpush1.bf16.xpose.msra.mxu0 0
          %1197 = vmatprep.subr.bf16.mxu0 0
          %1198 = vmatpush1.bf16.xpose.msra.mxu0 0
          %1199 = vmatprep.subr.bf16.mxu0 0
          %1200 = vmatpush1.bf16.xpose.msra.mxu0 0
          %1201 = vmatprep.subr.bf16.mxu0 0
          %1202 = vmatpush1.bf16.xpose.msra.mxu0 0
          %1203 = vmatprep.subr.bf16.mxu0 0
          %1204 = vmatpush1.bf16.xpose.msra.mxu0 0
          %1205 = vmatprep.subr.bf16.mxu0 0
          %1206 = vmatpush1.bf16.xpose.msra.mxu0 0
          %1207 = vmatprep.subr.bf16.mxu0 0
          %1208 = vmatpush1.bf16.xpose.msra.mxu0 0
          %1209 = vmatprep.subr.bf16.mxu0 0
          %1210 = vmatpush1.bf16.xpose.msra.mxu0 0
          %1211 = vmatprep.subr.bf16.mxu0 0
          %1212 = vmatpush1.bf16.xpose.msra.mxu0 0
          %1213 = vmatprep.subr.bf16.mxu0 0
          %1214 = vmatpush1.bf16.xpose.msra.mxu0 0
          %1215 = vmatprep.subr.bf16.mxu0 0
          %1216 = vmatpush1.bf16.xpose.msra.mxu0 0
          %1217 = vmatprep.mubr.bf16.mxu0 0
          %1218 = vmatmul.mubr.bf16.gmra.mrb[0].mxu0 %v1180
          %v1219 = vpop.f32.mrb[0].mxu0
          %v1220 = vadd.f32 0.0, %v1219
          %v1221 = vpop.f32.mrb[0].mxu0
          %v1222 = vpop.f32.mrb[0].mxu0
          %v1223 = vpop.f32.mrb[0].mxu0
          %1224 = vdwg.mxu0
          %v1226 = vsel %vm1086, %v1081, 0
          %v1229 = vsel %vm1086, %v1085, 0
          %1231 = vmatprep.subr.bf16.mxu0 0
          %1232 = vmatpush1.bf16.xpose.msra.mxu0 %v1229
          %1233 = vmatprep.subr.bf16.mxu0 0
          %1234 = vmatpush1.bf16.xpose.msra.mxu0 0
          %1235 = vmatprep.subr.bf16.mxu0 0
          %1236 = vmatpush1.bf16.xpose.msra.mxu0 0
          %1237 = vmatprep.subr.bf16.mxu0 0
          %1238 = vmatpush1.bf16.xpose.msra.mxu0 0
          %1239 = vmatprep.subr.bf16.mxu0 0
          %1240 = vmatpush1.bf16.xpose.msra.mxu0 0
          %1241 = vmatprep.subr.bf16.mxu0 0
          %1242 = vmatpush1.bf16.xpose.msra.mxu0 0
          %1243 = vmatprep.subr.bf16.mxu0 0
          %1244 = vmatpush1.bf16.xpose.msra.mxu0 0
          %1245 = vmatprep.subr.bf16.mxu0 0
          %1246 = vmatpush1.bf16.xpose.msra.mxu0 0
          %1247 = vmatprep.subr.bf16.mxu0 0
          %1248 = vmatpush1.bf16.xpose.msra.mxu0 0
          %1249 = vmatprep.subr.bf16.mxu0 0
          %1250 = vmatpush1.bf16.xpose.msra.mxu0 0
          %1251 = vmatprep.subr.bf16.mxu0 0
          %1252 = vmatpush1.bf16.xpose.msra.mxu0 0
          %1253 = vmatprep.subr.bf16.mxu0 0
          %1254 = vmatpush1.bf16.xpose.msra.mxu0 0
          %1255 = vmatprep.subr.bf16.mxu0 0
          %1256 = vmatpush1.bf16.xpose.msra.mxu0 0
          %1257 = vmatprep.subr.bf16.mxu0 0
          %1258 = vmatpush1.bf16.xpose.msra.mxu0 0
          %1259 = vmatprep.subr.bf16.mxu0 0
          %1260 = vmatpush1.bf16.xpose.msra.mxu0 0
          %1261 = vmatprep.subr.bf16.mxu0 0
          %1262 = vmatpush1.bf16.xpose.msra.mxu0 0
          %1263 = vmatprep.mubr.bf16.mxu0 0
          %1264 = vmatmul.mubr.bf16.gmra.mrb[0].mxu0 %v1226
          %v1265 = vpop.f32.mrb[0].mxu0
          %v1266 = vadd.f32 0.0, %v1265
          %v1267 = vpop.f32.mrb[0].mxu0
          %v1268 = vpop.f32.mrb[0].mxu0
          %v1269 = vpop.f32.mrb[0].mxu0
          %1270 = vdwg.mxu0
          %v1271 = vlaneseq
          %v1272 = vshrl.u32 %v1271, 7
          %v1273 = vstv %s467
          %v1274 = vadd.s32 %v1273, %v1272
          %v1275 = vlaneseq
          %v1276 = vand.u32 %v1275, 127
          %v1277 = vstv %s468
          %v1278 = vadd.s32 %v1277, %v1276
          %vm1279 = vcmp.le.s32.totalorder %v1278, %v1274
          %v1280 = vsel %vm1279, 1, 0
          %vm1281 = vcmp.eq.s32.totalorder %v1280, 1
          %v1282 = vsel %vm1281, %v1128, -1e+30
          %v1283 = vsel %vm1281, %v1174, -1e+30
          %v1284 = vsel %vm1281, %v1220, -1e+30
          %v1285 = vsel %vm1281, %v1266, -1e+30
          %v1286 = vld [vmem:[#allocation3] sm:$0xff]
          %v1287 = vld [vmem:[#allocation3 + $0x8] sm:$0xff]
          %v1288 = vld [vmem:[#allocation3 + $0x10] sm:$0xff]
          %v1289 = vld [vmem:[#allocation3 + $0x18] sm:$0xff]
          %v1290 = vsel %vm1086, %v1282, -inf
          %1291 = vmax.xlane.f32.xlu0 %v1290
          %v1292 = vpop.xlane.xlu0 %1291
          %v1293 = vsel %vm1086, %v1283, -inf
          %1294 = vmax.xlane.f32.xlu0 %v1293
          %v1295 = vpop.xlane.xlu0 %1294
          %v1296 = vsel %vm1086, %v1284, -inf
          %1297 = vmax.xlane.f32.xlu0 %v1296
          %v1298 = vpop.xlane.xlu0 %1297
          %v1299 = vsel %vm1086, %v1285, -inf
          %1300 = vmax.xlane.f32.xlu0 %v1299
          %v1301 = vpop.xlane.xlu0 %1300
          %v1302 = vmax.f32 %v1286, %v1292
          %v1303 = vmax.f32 %v1287, %v1295
          %v1304 = vmax.f32 %v1288, %v1298
          %v1305 = vmax.f32 %v1289, %v1301
          %v1306 = vsub.f32 %v1286, %v1302
          %v1307 = vsub.f32 %v1287, %v1303
          %v1308 = vsub.f32 %v1288, %v1304
          %v1309 = vsub.f32 %v1289, %v1305
          %v1310 = vmul.f32 %v1306, 1.442695
          %v1311 = vpow.pop %v1310
          %v1312 = vmul.f32 %v1307, 1.442695
          %v1313 = vpow.pop %v1312
          %v1314 = vmul.f32 %v1308, 1.442695
          %v1315 = vpow.pop %v1314
          %v1316 = vmul.f32 %v1309, 1.442695
          %v1317 = vpow.pop %v1316
          %1319 = vset.pattern.permute.xlu0 0
          %1320 = vperm.xlu0 %1319, %v1302
          %v1321 = vpop.permute.xlu0 %1320
          %1324 = vset.pattern.permute.xlu0 0
          %1325 = vperm.xlu0 %1324, %v1303
          %v1326 = vpop.permute.xlu0 %1325
          %1329 = vset.pattern.permute.xlu0 0
          %1330 = vperm.xlu0 %1329, %v1304
          %v1331 = vpop.permute.xlu0 %1330
          %1334 = vset.pattern.permute.xlu0 0
          %1335 = vperm.xlu0 %1334, %v1305
          %v1336 = vpop.permute.xlu0 %1335
          %v1338 = vsub.f32 %v1282, %v1321
          %v1339 = vsub.f32 %v1283, %v1326
          %v1340 = vsub.f32 %v1284, %v1331
          %v1341 = vsub.f32 %v1285, %v1336
          %v1342 = vmul.f32 %v1338, 1.442695
          %v1343 = vpow.pop %v1342
          %v1344 = vmul.f32 %v1339, 1.442695
          %v1345 = vpow.pop %v1344
          %v1346 = vmul.f32 %v1340, 1.442695
          %v1347 = vpow.pop %v1346
          %v1348 = vmul.f32 %v1341, 1.442695
          %v1349 = vpow.pop %v1348
          %v1350 = vld [vmem:[#allocation4] sm:$0xff]
          %v1351 = vld [vmem:[#allocation4 + $0x8] sm:$0xff]
          %v1352 = vld [vmem:[#allocation4 + $0x10] sm:$0xff]
          %v1353 = vld [vmem:[#allocation4 + $0x18] sm:$0xff]
          %v1354 = vmul.f32 %v1311, %v1350
          %v1355 = vmul.f32 %v1313, %v1351
          %v1356 = vmul.f32 %v1315, %v1352
          %v1357 = vmul.f32 %v1317, %v1353
          %v1358 = vsel %vm1086, %v1343, 0.0
          %1359 = vadd.xlane.f32.xlu0 %v1358
          %v1360 = vpop.xlane.xlu0 %1359
          %v1361 = vsel %vm1086, %v1345, 0.0
          %1362 = vadd.xlane.f32.xlu0 %v1361
          %v1363 = vpop.xlane.xlu0 %1362
          %v1364 = vsel %vm1086, %v1347, 0.0
          %1365 = vadd.xlane.f32.xlu0 %v1364
          %v1366 = vpop.xlane.xlu0 %1365
          %v1367 = vsel %vm1086, %v1349, 0.0
          %1368 = vadd.xlane.f32.xlu0 %v1367
          %v1369 = vpop.xlane.xlu0 %1368
          %v1370 = vadd.f32 %v1354, %v1360
          %v1371 = vadd.f32 %v1355, %v1363
          %v1372 = vadd.f32 %v1356, %v1366
          %v1373 = vadd.f32 %v1357, %v1369
          %vm1374 = vcmask 7168
          %1375 = vst.msk [vmem:[#allocation4] sm:$0xff] %vm1374, %v1370
          %1376 = vst.msk [vmem:[#allocation4 + $0x8] sm:$0xff] %vm1374, %v1371
          %1377 = vst.msk [vmem:[#allocation4 + $0x10] sm:$0xff] %vm1374, %v1372
          %1378 = vst.msk [vmem:[#allocation4 + $0x18] sm:$0xff] %vm1374, %v1373
          %v1379 = vld [vmem:[#allocation5] sm:$0xff]
          %v1380 = vld [vmem:[#allocation5 + $0x8] sm:$0xff]
          %v1381 = vld [vmem:[#allocation5 + $0x10] sm:$0xff]
          %v1382 = vld [vmem:[#allocation5 + $0x18] sm:$0xff]
          %1384 = vset.pattern.permute.xlu0 0
          %1385 = vperm.xlu0 %1384, %v1311
          %v1386 = vpop.permute.xlu0 %1385
          %1389 = vset.pattern.permute.xlu0 0
          %1390 = vperm.xlu0 %1389, %v1313
          %v1391 = vpop.permute.xlu0 %1390
          %1394 = vset.pattern.permute.xlu0 0
          %1395 = vperm.xlu0 %1394, %v1315
          %v1396 = vpop.permute.xlu0 %1395
          %1399 = vset.pattern.permute.xlu0 0
          %1400 = vperm.xlu0 %1399, %v1317
          %v1401 = vpop.permute.xlu0 %1400
          %v1403 = vmul.f32 %v1386, %v1379
          %v1404 = vmul.f32 %v1391, %v1380
          %v1405 = vmul.f32 %v1396, %v1381
          %v1406 = vmul.f32 %v1401, %v1382
          %v1407 = vpack.c.bf16 %v1343, %v1343
          %v1408 = vpack.c.bf16 %v1345, %v1345
          %v1409 = vpack.c.bf16 %v1347, %v1347
          %v1410 = vpack.c.bf16 %v1349, %v1349
          %v1411 = vpack.c.bf16 %v1074, %v1074
          %v1412 = vpack.c.bf16 %v1075, %v1075
          %v1413 = vpack.c.bf16 %v1076, %v1076
          %v1414 = vpack.c.bf16 %v1077, %v1077
          %v1416 = vsel %vm1086, %v1407, 0
          %vm1418 = vcmask 1043456
          %v1420 = vsel %vm1418, %v1411, 0
          %1422 = vmatprep.subr.bf16.mxu0 0
          %1423 = vmatpush1.bf16.msra.mxu0 %v1420
          %1424 = vmatprep.subr.bf16.mxu0 0
          %1425 = vmatpush1.bf16.msra.mxu0 0
          %1426 = vmatprep.subr.bf16.mxu0 0
          %1427 = vmatpush1.bf16.msra.mxu0 0
          %1428 = vmatprep.subr.bf16.mxu0 0
          %1429 = vmatpush1.bf16.msra.mxu0 0
          %1430 = vmatprep.subr.bf16.mxu0 0
          %1431 = vmatpush1.bf16.msra.mxu0 0
          %1432 = vmatprep.subr.bf16.mxu0 0
          %1433 = vmatpush1.bf16.msra.mxu0 0
          %1434 = vmatprep.subr.bf16.mxu0 0
          %1435 = vmatpush1.bf16.msra.mxu0 0
          %1436 = vmatprep.subr.bf16.mxu0 0
          %1437 = vmatpush1.bf16.msra.mxu0 0
          %1438 = vmatprep.subr.bf16.mxu0 0
          %1439 = vmatpush1.bf16.msra.mxu0 0
          %1440 = vmatprep.subr.bf16.mxu0 0
          %1441 = vmatpush1.bf16.msra.mxu0 0
          %1442 = vmatprep.subr.bf16.mxu0 0
          %1443 = vmatpush1.bf16.msra.mxu0 0
          %1444 = vmatprep.subr.bf16.mxu0 0
          %1445 = vmatpush1.bf16.msra.mxu0 0
          %1446 = vmatprep.subr.bf16.mxu0 0
          %1447 = vmatpush1.bf16.msra.mxu0 0
          %1448 = vmatprep.subr.bf16.mxu0 0
          %1449 = vmatpush1.bf16.msra.mxu0 0
          %1450 = vmatprep.subr.bf16.mxu0 0
          %1451 = vmatpush1.bf16.msra.mxu0 0
          %1452 = vmatprep.subr.bf16.mxu0 0
          %1453 = vmatpush1.bf16.msra.mxu0 0
          %1454 = vmatprep.mubr.bf16.mxu0 0
          %1455 = vmatmul.mubr.bf16.gmra.mrb[0].mxu0 %v1416
          %v1456 = vpop.f32.mrb[0].mxu0
          %v1457 = vadd.f32 0.0, %v1456
          %v1458 = vpop.f32.mrb[0].mxu0
          %v1459 = vpop.f32.mrb[0].mxu0
          %v1460 = vpop.f32.mrb[0].mxu0
          %1461 = vdwg.mxu0
          %v1463 = vsel %vm1086, %v1408, 0
          %v1466 = vsel %vm1418, %v1412, 0
          %1468 = vmatprep.subr.bf16.mxu0 0
          %1469 = vmatpush1.bf16.msra.mxu0 %v1466
          %1470 = vmatprep.subr.bf16.mxu0 0
          %1471 = vmatpush1.bf16.msra.mxu0 0
          %1472 = vmatprep.subr.bf16.mxu0 0
          %1473 = vmatpush1.bf16.msra.mxu0 0
          %1474 = vmatprep.subr.bf16.mxu0 0
          %1475 = vmatpush1.bf16.msra.mxu0 0
          %1476 = vmatprep.subr.bf16.mxu0 0
          %1477 = vmatpush1.bf16.msra.mxu0 0
          %1478 = vmatprep.subr.bf16.mxu0 0
          %1479 = vmatpush1.bf16.msra.mxu0 0
          %1480 = vmatprep.subr.bf16.mxu0 0
          %1481 = vmatpush1.bf16.msra.mxu0 0
          %1482 = vmatprep.subr.bf16.mxu0 0
          %1483 = vmatpush1.bf16.msra.mxu0 0
          %1484 = vmatprep.subr.bf16.mxu0 0
          %1485 = vmatpush1.bf16.msra.mxu0 0
          %1486 = vmatprep.subr.bf16.mxu0 0
          %1487 = vmatpush1.bf16.msra.mxu0 0
          %1488 = vmatprep.subr.bf16.mxu0 0
          %1489 = vmatpush1.bf16.msra.mxu0 0
          %1490 = vmatprep.subr.bf16.mxu0 0
          %1491 = vmatpush1.bf16.msra.mxu0 0
          %1492 = vmatprep.subr.bf16.mxu0 0
          %1493 = vmatpush1.bf16.msra.mxu0 0
          %1494 = vmatprep.subr.bf16.mxu0 0
          %1495 = vmatpush1.bf16.msra.mxu0 0
          %1496 = vmatprep.subr.bf16.mxu0 0
          %1497 = vmatpush1.bf16.msra.mxu0 0
          %1498 = vmatprep.subr.bf16.mxu0 0
          %1499 = vmatpush1.bf16.msra.mxu0 0
          %1500 = vmatprep.mubr.bf16.mxu0 0
          %1501 = vmatmul.mubr.bf16.gmra.mrb[0].mxu0 %v1463
          %v1502 = vpop.f32.mrb[0].mxu0
          %v1503 = vadd.f32 0.0, %v1502
          %v1504 = vpop.f32.mrb[0].mxu0
          %v1505 = vpop.f32.mrb[0].mxu0
          %v1506 = vpop.f32.mrb[0].mxu0
          %1507 = vdwg.mxu0
          %v1509 = vsel %vm1086, %v1409, 0
          %v1512 = vsel %vm1418, %v1413, 0
          %1514 = vmatprep.subr.bf16.mxu0 0
          %1515 = vmatpush1.bf16.msra.mxu0 %v1512
          %1516 = vmatprep.subr.bf16.mxu0 0
          %1517 = vmatpush1.bf16.msra.mxu0 0
          %1518 = vmatprep.subr.bf16.mxu0 0
          %1519 = vmatpush1.bf16.msra.mxu0 0
          %1520 = vmatprep.subr.bf16.mxu0 0
          %1521 = vmatpush1.bf16.msra.mxu0 0
          %1522 = vmatprep.subr.bf16.mxu0 0
          %1523 = vmatpush1.bf16.msra.mxu0 0
          %1524 = vmatprep.subr.bf16.mxu0 0
          %1525 = vmatpush1.bf16.msra.mxu0 0
          %1526 = vmatprep.subr.bf16.mxu0 0
          %1527 = vmatpush1.bf16.msra.mxu0 0
          %1528 = vmatprep.subr.bf16.mxu0 0
          %1529 = vmatpush1.bf16.msra.mxu0 0
          %1530 = vmatprep.subr.bf16.mxu0 0
          %1531 = vmatpush1.bf16.msra.mxu0 0
          %1532 = vmatprep.subr.bf16.mxu0 0
          %1533 = vmatpush1.bf16.msra.mxu0 0
          %1534 = vmatprep.subr.bf16.mxu0 0
          %1535 = vmatpush1.bf16.msra.mxu0 0
          %1536 = vmatprep.subr.bf16.mxu0 0
          %1537 = vmatpush1.bf16.msra.mxu0 0
          %1538 = vmatprep.subr.bf16.mxu0 0
          %1539 = vmatpush1.bf16.msra.mxu0 0
          %1540 = vmatprep.subr.bf16.mxu0 0
          %1541 = vmatpush1.bf16.msra.mxu0 0
          %1542 = vmatprep.subr.bf16.mxu0 0
          %1543 = vmatpush1.bf16.msra.mxu0 0
          %1544 = vmatprep.subr.bf16.mxu0 0
          %1545 = vmatpush1.bf16.msra.mxu0 0
          %1546 = vmatprep.mubr.bf16.mxu0 0
          %1547 = vmatmul.mubr.bf16.gmra.mrb[0].mxu0 %v1509
          %v1548 = vpop.f32.mrb[0].mxu0
          %v1549 = vadd.f32 0.0, %v1548
          %v1550 = vpop.f32.mrb[0].mxu0
          %v1551 = vpop.f32.mrb[0].mxu0
          %v1552 = vpop.f32.mrb[0].mxu0
          %1553 = vdwg.mxu0
          %v1555 = vsel %vm1086, %v1410, 0
          %v1558 = vsel %vm1418, %v1414, 0
          %1560 = vmatprep.subr.bf16.mxu0 0
          %1561 = vmatpush1.bf16.msra.mxu0 %v1558
          %1562 = vmatprep.subr.bf16.mxu0 0
          %1563 = vmatpush1.bf16.msra.mxu0 0
          %1564 = vmatprep.subr.bf16.mxu0 0
          %1565 = vmatpush1.bf16.msra.mxu0 0
          %1566 = vmatprep.subr.bf16.mxu0 0
          %1567 = vmatpush1.bf16.msra.mxu0 0
          %1568 = vmatprep.subr.bf16.mxu0 0
          %1569 = vmatpush1.bf16.msra.mxu0 0
          %1570 = vmatprep.subr.bf16.mxu0 0
          %1571 = vmatpush1.bf16.msra.mxu0 0
          %1572 = vmatprep.subr.bf16.mxu0 0
          %1573 = vmatpush1.bf16.msra.mxu0 0
          %1574 = vmatprep.subr.bf16.mxu0 0
          %1575 = vmatpush1.bf16.msra.mxu0 0
          %1576 = vmatprep.subr.bf16.mxu0 0
          %1577 = vmatpush1.bf16.msra.mxu0 0
          %1578 = vmatprep.subr.bf16.mxu0 0
          %1579 = vmatpush1.bf16.msra.mxu0 0
          %1580 = vmatprep.subr.bf16.mxu0 0
          %1581 = vmatpush1.bf16.msra.mxu0 0
          %1582 = vmatprep.subr.bf16.mxu0 0
          %1583 = vmatpush1.bf16.msra.mxu0 0
          %1584 = vmatprep.subr.bf16.mxu0 0
          %1585 = vmatpush1.bf16.msra.mxu0 0
          %1586 = vmatprep.subr.bf16.mxu0 0
          %1587 = vmatpush1.bf16.msra.mxu0 0
          %1588 = vmatprep.subr.bf16.mxu0 0
          %1589 = vmatpush1.bf16.msra.mxu0 0
          %1590 = vmatprep.subr.bf16.mxu0 0
          %1591 = vmatpush1.bf16.msra.mxu0 0
          %1592 = vmatprep.mubr.bf16.mxu0 0
          %1593 = vmatmul.mubr.bf16.gmra.mrb[0].mxu0 %v1555
          %v1594 = vpop.f32.mrb[0].mxu0
          %v1595 = vadd.f32 0.0, %v1594
          %v1596 = vpop.f32.mrb[0].mxu0
          %v1597 = vpop.f32.mrb[0].mxu0
          %v1598 = vpop.f32.mrb[0].mxu0
          %1599 = vdwg.mxu0
          %v1600 = vadd.f32 %v1403, %v1457
          %v1601 = vadd.f32 %v1404, %v1503
          %v1602 = vadd.f32 %v1405, %v1549
          %v1603 = vadd.f32 %v1406, %v1595
          %1604 = vst.msk [vmem:[#allocation5] sm:$0xff] %vm1086, %v1600
          %1605 = vst.msk [vmem:[#allocation5 + $0x8] sm:$0xff] %vm1086, %v1601
          %1606 = vst.msk [vmem:[#allocation5 + $0x10] sm:$0xff] %vm1086, %v1602
          %1607 = vst.msk [vmem:[#allocation5 + $0x18] sm:$0xff] %vm1086, %v1603
          %1608 = vst.msk [vmem:[#allocation3] sm:$0xff] %vm1374, %v1302
          %1609 = vst.msk [vmem:[#allocation3 + $0x8] sm:$0xff] %vm1374, %v1303
          %1610 = vst.msk [vmem:[#allocation3 + $0x10] sm:$0xff] %vm1374, %v1304
          %1611 = vst.msk [vmem:[#allocation3 + $0x18] sm:$0xff] %vm1374, %v1305
        $region92: #{tpu_custom_call.1} parent=51 // pred_fallthru
          _
        // Predicated region
        $region93: #{tpu_custom_call.1} parent=51 // pred_check
          %p1612 = pneg %p469
        $region94: #{tpu_custom_call.1} parent=51 // pred_check_branch
          %1614 = sbr.rel (%p1612) target = $region96
        $region95: #{tpu_custom_call.1} parent=51 // pred_region
          %v1615 = vld [vmem:[#allocation5] sm:$0xff]
          %v1616 = vld [vmem:[#allocation5 + $0x8] sm:$0xff]
          %v1617 = vld [vmem:[#allocation5 + $0x10] sm:$0xff]
          %v1618 = vld [vmem:[#allocation5 + $0x18] sm:$0xff]
          %v1619 = vld [vmem:[#allocation4] sm:$0xff]
          %v1620 = vld [vmem:[#allocation4 + $0x8] sm:$0xff]
          %v1621 = vld [vmem:[#allocation4 + $0x10] sm:$0xff]
          %v1622 = vld [vmem:[#allocation4 + $0x18] sm:$0xff]
          %v1623 = vrcp.pop %v1619
          %v1624 = vrcp.pop %v1620
          %v1625 = vrcp.pop %v1621
          %v1626 = vrcp.pop %v1622
          %1628 = vset.pattern.permute.xlu0 0
          %1629 = vperm.xlu0 %1628, %v1623
          %v1630 = vpop.permute.xlu0 %1629
          %1633 = vset.pattern.permute.xlu0 0
          %1634 = vperm.xlu0 %1633, %v1624
          %v1635 = vpop.permute.xlu0 %1634
          %1638 = vset.pattern.permute.xlu0 0
          %1639 = vperm.xlu0 %1638, %v1625
          %v1640 = vpop.permute.xlu0 %1639
          %1643 = vset.pattern.permute.xlu0 0
          %1644 = vperm.xlu0 %1643, %v1626
          %v1645 = vpop.permute.xlu0 %1644
          %v1647 = vmul.f32 %v1615, %v1630
          %v1648 = vmul.f32 %v1616, %v1635
          %v1649 = vmul.f32 %v1617, %v1640
          %v1650 = vmul.f32 %v1618, %v1645
          %v1651 = vcombine.low %v1647, %v1649
          %v1652 = vcombine.high %v1647, %v1649
          %v1654 = vunpack.c.l.s4 1983009808
          %v1655 = vunpack.c.0.s8 %v1654
          %v1656 = vlaneseq
          %v1657 = vshrl.u32 %v1656, 7
          %v1658 = vsub.s32 %v1655, %v1657
          %v1659 = vrot.slane %v1651, %v1658
          %v1661 = vunpack.c.l.s4 1983009808
          %v1662 = vunpack.c.0.s8 %v1661
          %v1663 = vlaneseq
          %v1664 = vshrl.u32 %v1663, 7
          %v1665 = vsub.s32 %v1662, %v1664
          %v1666 = vrot.slane %v1652, %v1665
          %v1667 = vcombine.low %v1648, %v1650
          %v1668 = vcombine.high %v1648, %v1650
          %v1670 = vunpack.c.l.s4 1983009808
          %v1671 = vunpack.c.0.s8 %v1670
          %v1672 = vlaneseq
          %v1673 = vshrl.u32 %v1672, 7
          %v1674 = vsub.s32 %v1671, %v1673
          %v1675 = vrot.slane %v1667, %v1674
          %v1677 = vunpack.c.l.s4 1983009808
          %v1678 = vunpack.c.0.s8 %v1677
          %v1679 = vlaneseq
          %v1680 = vshrl.u32 %v1679, 7
          %v1681 = vsub.s32 %v1678, %v1680
          %v1682 = vrot.slane %v1668, %v1681
          %v1683 = vcombine.low %v1659, %v1675
          %v1684 = vcombine.high %v1659, %v1675
          %v1686 = vunpack.c.l.s4 1934713408
          %v1687 = vunpack.c.0.s8 %v1686
          %v1688 = vlaneseq
          %v1689 = vshrl.u32 %v1688, 7
          %v1690 = vsub.s32 %v1687, %v1689
          %v1691 = vrot.slane %v1683, %v1690
          %v1693 = vunpack.c.l.s4 1934713408
          %v1694 = vunpack.c.0.s8 %v1693
          %v1695 = vlaneseq
          %v1696 = vshrl.u32 %v1695, 7
          %v1697 = vsub.s32 %v1694, %v1696
          %v1698 = vrot.slane %v1684, %v1697
          %v1699 = vcombine.low %v1666, %v1682
          %v1700 = vcombine.high %v1666, %v1682
          %v1702 = vunpack.c.l.s4 1934713408
          %v1703 = vunpack.c.0.s8 %v1702
          %v1704 = vlaneseq
          %v1705 = vshrl.u32 %v1704, 7
          %v1706 = vsub.s32 %v1703, %v1705
          %v1707 = vrot.slane %v1699, %v1706
          %v1709 = vunpack.c.l.s4 1934713408
          %v1710 = vunpack.c.0.s8 %v1709
          %v1711 = vlaneseq
          %v1712 = vshrl.u32 %v1711, 7
          %v1713 = vsub.s32 %v1710, %v1712
          %v1714 = vrot.slane %v1700, %v1713
          %v1715 = vcombine.high %v1691, 0.0
          %v1716 = vcombine.high %v1698, 0.0
          %v1717 = vcombine.high %v1707, 0.0
          %v1718 = vcombine.high %v1714, 0.0
          %v1719 = vcombine.low %v1691, %v1698
          %v1721 = vunpack.c.l.s4 1983009808
          %v1722 = vunpack.c.0.s8 %v1721
          %v1723 = vlaneseq
          %v1724 = vshrl.u32 %v1723, 7
          %v1725 = vsub.s32 %v1722, %v1724
          %v1726 = vrot.slane %v1719, %v1725
          %v1727 = vcombine.low %v1715, %v1716
          %v1729 = vunpack.c.l.s4 1983009808
          %v1730 = vunpack.c.0.s8 %v1729
          %v1731 = vlaneseq
          %v1732 = vshrl.u32 %v1731, 7
          %v1733 = vsub.s32 %v1730, %v1732
          %v1734 = vrot.slane %v1727, %v1733
          %v1735 = vcombine.low %v1707, %v1714
          %v1737 = vunpack.c.l.s4 1983009808
          %v1738 = vunpack.c.0.s8 %v1737
          %v1739 = vlaneseq
          %v1740 = vshrl.u32 %v1739, 7
          %v1741 = vsub.s32 %v1738, %v1740
          %v1742 = vrot.slane %v1735, %v1741
          %v1743 = vcombine.low %v1717, %v1718
          %v1745 = vunpack.c.l.s4 1983009808
          %v1746 = vunpack.c.0.s8 %v1745
          %v1747 = vlaneseq
          %v1748 = vshrl.u32 %v1747, 7
          %v1749 = vsub.s32 %v1746, %v1748
          %v1750 = vrot.slane %v1743, %v1749
          %v1751 = vcombine.low %v1726, %v1734
          %v1752 = vcombine.high %v1726, %v1734
          %v1754 = vunpack.c.l.s4 1934713408
          %v1755 = vunpack.c.0.s8 %v1754
          %v1756 = vlaneseq
          %v1757 = vshrl.u32 %v1756, 7
          %v1758 = vsub.s32 %v1755, %v1757
          %v1759 = vrot.slane %v1751, %v1758
          %v1761 = vunpack.c.l.s4 1934713408
          %v1762 = vunpack.c.0.s8 %v1761
          %v1763 = vlaneseq
          %v1764 = vshrl.u32 %v1763, 7
          %v1765 = vsub.s32 %v1762, %v1764
          %v1766 = vrot.slane %v1752, %v1765
          %v1767 = vcombine.low %v1742, %v1750
          %v1768 = vcombine.high %v1742, %v1750
          %v1770 = vunpack.c.l.s4 1934713408
          %v1771 = vunpack.c.0.s8 %v1770
          %v1772 = vlaneseq
          %v1773 = vshrl.u32 %v1772, 7
          %v1774 = vsub.s32 %v1771, %v1773
          %v1775 = vrot.slane %v1767, %v1774
          %v1777 = vunpack.c.l.s4 1934713408
          %v1778 = vunpack.c.0.s8 %v1777
          %v1779 = vlaneseq
          %v1780 = vshrl.u32 %v1779, 7
          %v1781 = vsub.s32 %v1778, %v1780
          %v1782 = vrot.slane %v1768, %v1781
          %v1783 = vcombine.low %v1759, %v1775
          %v1784 = vcombine.high %v1759, %v1775
          %v1785 = vcombine.low %v1766, %v1782
          %v1786 = vcombine.high %v1766, %v1782
          %1788 = vrot.lane.b32.xlu0 %v1784, 8
          %v1789 = vpop.permute.xlu0 %1788
          %1792 = vrot.lane.b32.xlu0 %v1785, 16
          %v1793 = vpop.permute.xlu0 %1792
          %1796 = vrot.lane.b32.xlu0 %v1786, 24
          %v1797 = vpop.permute.xlu0 %1796
          %vm1799 = vcmask 64512
          %v1800 = vsel %vm1799, %v1783, %v1789
          %vm1801 = vcmask 130048
          %v1802 = vsel %vm1801, %v1800, %v1793
          %vm1803 = vcmask 195584
          %v1804 = vsel %vm1803, %v1802, %v1797
          %v1805 = vpack.c.bf16 %v1804, %v1804
          %v1806 = vld [vmem:[#allocation14] sm:$0xf]
          %v1807 = vld [vmem:[#allocation14 + $0x4] sm:$0xf]
          %v1808 = vld [vmem:[#allocation14 + $0x8] sm:$0xf]
          %v1809 = vld [vmem:[#allocation14 + $0xc] sm:$0xf]
          %v1810 = vld [vmem:[#allocation18] sm:$0x1]
          %v1812 = vlaneseq
          %v1813 = vshrl.u32 %v1812, 7
          %v1814 = vsub.s32 0, %v1813
          %v1815 = vrot.slane %v1810, %v1814
          %v1821 = vunpack.c.l.b16 %v1806
          %v1822 = vunpack.c.l.b16 %v1807
          %v1823 = vunpack.c.l.b16 %v1808
          %v1824 = vunpack.c.l.b16 %v1809
          %v1825 = vpack.c.b16 %v1822, %v1821
          %v1826 = vpack.c.b16 %v1824, %v1823
          %vm1829 = vcmask 261120
          %v1831 = vsel %vm1829, %v1805, 0
          %1833 = vmatprep.subr.bf16.mxu0 0
          %1834 = vmatpush1.bf16.msra.mxu0 %v1825
          %1835 = vmatprep.subr.bf16.mxu0 0
          %1836 = vmatpush1.bf16.msra.mxu0 %v1826
          %1837 = vmatprep.subr.bf16.mxu0 0
          %1838 = vmatpush1.bf16.msra.mxu0 0
          %1839 = vmatprep.subr.bf16.mxu0 0
          %1840 = vmatpush1.bf16.msra.mxu0 0
          %1841 = vmatprep.subr.bf16.mxu0 0
          %1842 = vmatpush1.bf16.msra.mxu0 0
          %1843 = vmatprep.subr.bf16.mxu0 0
          %1844 = vmatpush1.bf16.msra.mxu0 0
          %1845 = vmatprep.subr.bf16.mxu0 0
          %1846 = vmatpush1.bf16.msra.mxu0 0
          %1847 = vmatprep.subr.bf16.mxu0 0
          %1848 = vmatpush1.bf16.msra.mxu0 0
          %1849 = vmatprep.subr.bf16.mxu0 0
          %1850 = vmatpush1.bf16.msra.mxu0 0
          %1851 = vmatprep.subr.bf16.mxu0 0
          %1852 = vmatpush1.bf16.msra.mxu0 0
          %1853 = vmatprep.subr.bf16.mxu0 0
          %1854 = vmatpush1.bf16.msra.mxu0 0
          %1855 = vmatprep.subr.bf16.mxu0 0
          %1856 = vmatpush1.bf16.msra.mxu0 0
          %1857 = vmatprep.subr.bf16.mxu0 0
          %1858 = vmatpush1.bf16.msra.mxu0 0
          %1859 = vmatprep.subr.bf16.mxu0 0
          %1860 = vmatpush1.bf16.msra.mxu0 0
          %1861 = vmatprep.subr.bf16.mxu0 0
          %1862 = vmatpush1.bf16.msra.mxu0 0
          %1863 = vmatprep.subr.bf16.mxu0 0
          %1864 = vmatpush1.bf16.msra.mxu0 0
          %1865 = vmatprep.mubr.bf16.mxu0 0
          %1866 = vmatmul.mubr.bf16.gmra.mrb[0].mxu0 %v1831
          %v1867 = vpop.f32.mrb[0].mxu0
          %v1868 = vadd.f32 %v1815, %v1867
          %v1869 = vpop.f32.mrb[0].mxu0
          %v1870 = vpop.f32.mrb[0].mxu0
          %v1871 = vpop.f32.mrb[0].mxu0
          %1872 = vdwg.mxu0
          %1873 = vst.msk [vmem:[%s465] sm:$0xff] %vm1829, %v1868
        $region96: #{tpu_custom_call.1} parent=51 // pred_fallthru
          _
        %s1874 = sand.u32 %s242, 1
        %s1875 = scalar_lea.sflag [#allocation8], %s1874
        %s1876 = sand.u32 %s242, 1
        %s1877 = smul.addr %s1876, 8
        %s1878 = scalar_lea.vmem [#allocation20], %s1877
        // Predicated region
        $region97: #{tpu_custom_call.1} parent=51 // pred_check
          %p1879 = pneg %p252
        $region98: #{tpu_custom_call.1} parent=51 // pred_check_branch
          %1881 = sbr.rel (%p1879) target = $region100
        $region99: #{tpu_custom_call.1} parent=51 // pred_region
          %s1883 = ssub.s32 128, 128
          %1884 = vsyncadd %s1875, %s1883
          %s1885 = sadd.s32 %s37, %s36
          %s1886 = smul.addr %s1885, 128
          %s1887 = scalar_lea.hbm %s8, %s1886
          %s1889 = sshll.u32 %s1878, 4
          %s1890 = int_to_ptr.vmem [resolvable:$true] %s1889
          %1892 = dma.vmem_to_hbm [thread:$0]  %s1890, 128, %s1887, %s1875
        $region100: #{tpu_custom_call.1} parent=51 // pred_fallthru
          _
      $region52: #{tpu_custom_call.1} parent=5 // pred_fallthru
        _
      %p1893 = scmp.le.s32.totalorder 2, %s26
      // Predicated region
      $region101: #{tpu_custom_call.1} parent=5 // pred_check
        %p1894 = pneg %p1893
      $region102: #{tpu_custom_call.1} parent=5 // pred_check_branch
        %1896 = sbr.rel (%p1894) target = $region104
      $region103: #{tpu_custom_call.1} parent=5 // pred_region
        %s1897 = ssub.s32 %s26, 2
        // Predicated region
        $region105: #{tpu_custom_call.1} parent=103 // pred_check
          %p1898 = pneg %p258
        $region106: #{tpu_custom_call.1} parent=103 // pred_check_branch
          %1900 = sbr.rel (%p1898) target = $region108
        $region107: #{tpu_custom_call.1} parent=103 // pred_region
          %s1901 = sand.u32 %s243, 1
          %s1902 = scalar_lea.sflag [#allocation8], %s1901
          %s1903 = sand.u32 %s243, 1
          %s1904 = smul.addr %s1903, 8
          %s1905 = scalar_lea.vmem [#allocation20], %s1904
          %1906 = dma.done %s1902, 128
        $region108: #{tpu_custom_call.1} parent=103 // pred_fallthru
          _
      $region104: #{tpu_custom_call.1} parent=5 // pred_fallthru
        _
    $region6: #{tpu_custom_call.1} parent=1 // loop_footer
      %s30 = sadd.s32 1, %s26
    $region7: #{tpu_custom_call.1} parent=1 // loop_footer_branch
      %25 = sbr.rel target = $region3
    $region8: #{tpu_custom_call.1} parent=1 // loop_exit
      _
    %1907 = vsyncpa [#allocation7], 1
    %s1908 = scalar_lea.sflag [#allocation7], 1
    %1909 = vsyncpa %s1908, 1
    %1910 = vsyncpa [#allocation10], 1
    %s1911 = scalar_lea.sflag [#allocation10], 1
    %1912 = vsyncpa %s1911, 1
    %1913 = vsyncpa [#allocation13], 1
    %1914 = vsyncpa [#allocation16], 1
    %1915 = vsyncpa [#allocation19], 1
    %1916 = vsyncpa [#allocation8], 1
    %s1917 = scalar_lea.sflag [#allocation8], 1
    %1918 = vsyncpa %s1917, 1

</llo_original>
